<compile_context>
chip_gen: v6e
topology: v6e:2x2x1
jax: 0.10.0
libtpu: 0.0.40
codegen_flags: <defaults>
</compile_context>

<pallas_src>
import functools

import jax
import jax.numpy as jnp
from jax.experimental import pallas as pl
from jax.experimental.pallas import tpu as pltpu


def _feature_map(x):
    # elu(x) + 1  ==  x + 1 (x > 0) else exp(x)
    return jnp.where(x > 0, x + 1.0, jnp.exp(x))


def _linear_attention_kernel(q_ref, k_ref, v_ref, mask_ref, o_ref, *,
                             num_heads, qk_dim, v_dim, eps, matmul_dtype,
                             approx_reciprocal):
    """One (n, t) slab: q_ref (L, H*D), k_ref (S, H*D), v_ref (S, H*M),
    mask_ref (S, 1), o_ref (L, H*M)."""
    H, D, M = num_heads, qk_dim, v_dim

    # Key-length mask, shared by all heads of this (n, t) slab: (S, 1)
    m = mask_ref[...].astype(jnp.float32)

    # Static (unrolled) loop over heads; all per-head slices are lane slices
    # of the 2-D slabs with static offsets.
    for h in range(H):
        q_h = _feature_map(q_ref[:, pl.ds(h * D, D)].astype(jnp.float32))       # (L, D)
        k_h = _feature_map(k_ref[:, pl.ds(h * D, D)].astype(jnp.float32)) * m   # (S, D)
        v_h = v_ref[:, pl.ds(h * M, M)].astype(jnp.float32)                     # (S, M)

        # Normalizer Z = 1 / (Phi(Q) . sum_s Phi(K) + eps): VPU mul + XLU lane
        # reduce -- keeps the MXU free for the real matmuls.  Exact reciprocal
        # by default (approx EUP reciprocal costs ~3e-3 abs error).
        k_sum = jnp.sum(k_h, axis=0, keepdims=True)                             # (1, D)
        denom = jnp.sum(q_h * k_sum, axis=-1, keepdims=True) + eps              # (L, 1)
        if approx_reciprocal:
            z = pl.reciprocal(denom, approx=True)                               # (L, 1)
        else:
            z = 1.0 / denom                                                     # (L, 1)

        if matmul_dtype is not None:
            qm = q_h.astype(matmul_dtype)
            km = k_h.astype(matmul_dtype)
            vm = v_h.astype(matmul_dtype)
        else:
            qm, km, vm = q_h, k_h, v_h

        # KV = Phi(K)^T V  (contract over S) -> (D, M); MXU, f32 accumulation.
        kv = jax.lax.dot_general(km, vm, (((0,), (0,)), ((), ())),
                                 preferred_element_type=jnp.float32)
        if matmul_dtype is not None:
            kv = kv.astype(matmul_dtype)

        # out_h = (Phi(Q) @ KV) * Z -> (L, M), written into the lane-dense
        # (L, H*M) output slab at a static lane offset.
        out_h = jnp.dot(qm, kv, preferred_element_type=jnp.float32) * z
        o_ref[:, pl.ds(h * M, M)] = out_h.astype(o_ref.dtype)


def vectorized_linear_attention(queries, keys, values, key_lengths_float, *,
                                eps=1e-6, attn_mask_all_ones=True,
                                matmul_dtype=None, approx_reciprocal=False):
    """JAX/Pallas equivalent of VectorizedLinearAttention.forward.

    queries (N,T,L,H,D), keys (N,T,S,H,D), values (N,T,S,H,M),
    key_lengths_float (N,S) 0/1 matrix (key_lengths.float_matrix).
    attn_mask is represented only by its `all_ones` property (the torch module
    rejects anything else). Returns (N,T,L,H,M).
    """
    if not attn_mask_all_ones:
        raise RuntimeError(
            "LinearAttention does not support arbitrary attention masks")

    N, T, L, H, D = queries.shape
    _, _, S, _, M = values.shape

    # Free (no data movement) reshapes: fold heads into the trailing dim so
    # each grid step reads/writes contiguous lane-dense slabs. No transposes.
    q = queries.reshape(N, T, L, H * D)
    k = keys.reshape(N, T, S, H * D)
    v = values.reshape(N, T, S, H * M)
    mask = key_lengths_float.astype(jnp.float32).reshape(N, S, 1)

    # Rough per-step working set (the pipeline double-buffers it) -> VMEM cap.
    itemsize = jnp.dtype(queries.dtype).itemsize
    slab_bytes = (L * H * D + S * H * D + S * H * M + S + L * H * M) * itemsize
    vmem_limit = int(min(max(6 * slab_bytes, 32 * 1024 * 1024),
                         56 * 1024 * 1024))  # stays within v7x's 64 MiB VMEM

    kernel = functools.partial(
        _linear_attention_kernel,
        num_heads=H, qk_dim=D, v_dim=M, eps=eps, matmul_dtype=matmul_dtype,
        approx_reciprocal=approx_reciprocal)

    out = pl.pallas_call(
        kernel,
        out_shape=jax.ShapeDtypeStruct((N, T, L, H * M), queries.dtype),
        grid_spec=pltpu.PrefetchScalarGridSpec(
            num_scalar_prefetch=0,
            grid=(N, T),
            in_specs=[
                pl.BlockSpec((None, None, L, H * D), lambda n, t: (n, t, 0, 0)),
                pl.BlockSpec((None, None, S, H * D), lambda n, t: (n, t, 0, 0)),
                pl.BlockSpec((None, None, S, H * M), lambda n, t: (n, t, 0, 0)),
                pl.BlockSpec((None, S, 1), lambda n, t: (n, 0, 0)),
            ],
            out_specs=pl.BlockSpec((None, None, L, H * M),
                                   lambda n, t: (n, t, 0, 0)),
        ),
        compiler_params=pltpu.CompilerParams(
            dimension_semantics=("parallel", "parallel"),
            vmem_limit_bytes=vmem_limit),
    )(q, k, v, mask)

    # Free reshape: split heads back out of the lane dim.
    return out.reshape(N, T, L, H, M)


def _reference(queries, keys, values, key_lengths_float, eps=1e-6):
    phi = lambda x: jnp.where(x > 0, x + 1.0, jnp.exp(x))
    Q = phi(queries)
    K = phi(keys) * key_lengths_float[:, None, :, None, None]
    KV = jnp.einsum('ntshd,ntshm->nthmd', K, values)
    Z = 1.0 / (jnp.einsum('ntlhd,nthd->ntlh', Q, K.sum(axis=2)) + eps)
    return jnp.einsum('ntlhd,nthmd,ntlh->ntlhm', Q, KV, Z)


if __name__ == "__main__":
    # Small shapes consistent with the module's ntlhd/ntshd conventions.
    N, T, L, S, H, D, M = 2, 3, 16, 16, 4, 32, 32

    key = jax.random.PRNGKey(0)
    kq, kk, kv = jax.random.split(key, 3)
    queries = jax.random.normal(kq, (N, T, L, H, D), dtype=jnp.float32)
    keys    = jax.random.normal(kk, (N, T, S, H, D), dtype=jnp.float32)
    values  = jax.random.normal(kv, (N, T, S, H, M), dtype=jnp.float32)

    # key_lengths.float_matrix : (N, S) 0/1 mask derived from per-batch lengths
    lengths = jnp.array([S, S - 5], dtype=jnp.int32)
    key_lengths_float = (jnp.arange(S)[None, :] < lengths[:, None]).astype(jnp.float32)

    out = vectorized_linear_attention(queries, keys, values, key_lengths_float)
    out = jax.block_until_ready(out)

    ref = _reference(queries, keys, values, key_lengths_float)
    assert out.shape == (N, T, L, H, M)
    # Exact f32 reciprocal + f32 matmuls -> tight agreement with the reference.
    max_err = float(jnp.max(jnp.abs(out - ref)))
    assert jnp.allclose(out, ref, atol=1e-3, rtol=1e-3), (
        "mismatch vs reference, max abs err = %e" % max_err)

    print("KERNEL_OK")
</pallas_src>

<mosaic_0001>
module attributes {stable_mosaic.version = 11 : i64} {
  func.func @_linear_attention_kernel(%arg0: i32, %arg1: i32, %arg2: memref<1x1x16x128xf32, #tpu.memory_space<vmem>>, %arg3: memref<1x1x16x128xf32, #tpu.memory_space<vmem>>, %arg4: memref<1x1x16x128xf32, #tpu.memory_space<vmem>>, %arg5: memref<1x16x1xf32, #tpu.memory_space<vmem>>, %arg6: memref<1x1x16x128xf32, #tpu.memory_space<vmem>>) attributes {dimension_semantics = [#tpu.dimension_semantics<parallel>, #tpu.dimension_semantics<parallel>], iteration_bounds = array<i64: 2, 3>, scalar_prefetch = 0 : i64, scratch_operands = 0 : i64, tpu.core_type = #tpu.core_type<tc>, window_params = [{transform_indices = @transform_0, window_bounds = array<i64: 1, 1, 16, 128>}, {transform_indices = @transform_1, window_bounds = array<i64: 1, 1, 16, 128>}, {transform_indices = @transform_2, window_bounds = array<i64: 1, 1, 16, 128>}, {transform_indices = @transform_3, window_bounds = array<i64: 1, 16, 1>}, {transform_indices = @transform_4, window_bounds = array<i64: 1, 1, 16, 128>}]} {
    %c0 = arith.constant 0 : index
    %c0_0 = arith.constant 0 : index
    %c0_1 = arith.constant 0 : index
    %0 = vector.load %arg5[%c0, %c0_0, %c0_1] : memref<1x16x1xf32, #tpu.memory_space<vmem>>, vector<1x16x1xf32>
    %1 = vector.shape_cast %0 : vector<1x16x1xf32> to vector<16x1xf32>
    %c0_2 = arith.constant 0 : index
    %c0_3 = arith.constant 0 : index
    %c0_4 = arith.constant 0 : index
    %c0_5 = arith.constant 0 : index
    %2 = vector.load %arg2[%c0_2, %c0_3, %c0_4, %c0_5] : memref<1x1x16x128xf32, #tpu.memory_space<vmem>>, vector<1x1x16x32xf32>
    %3 = vector.shape_cast %2 : vector<1x1x16x32xf32> to vector<16x32xf32>
    %cst = arith.constant 0.000000e+00 : f32
    %4 = vector.broadcast %cst : f32 to vector<16x32xf32>
    %5 = arith.cmpf ogt, %3, %4 : vector<16x32xf32>
    %cst_6 = arith.constant 1.000000e+00 : f32
    %6 = vector.broadcast %cst_6 : f32 to vector<16x32xf32>
    %7 = arith.addf %3, %6 : vector<16x32xf32>
    %8 = math.exp %3 : vector<16x32xf32>
    %9 = arith.select %5, %7, %8 : vector<16x32xi1>, vector<16x32xf32>
    %c0_7 = arith.constant 0 : index
    %c0_8 = arith.constant 0 : index
    %c0_9 = arith.constant 0 : index
    %c0_10 = arith.constant 0 : index
    %10 = vector.load %arg3[%c0_7, %c0_8, %c0_9, %c0_10] : memref<1x1x16x128xf32, #tpu.memory_space<vmem>>, vector<1x1x16x32xf32>
    %11 = vector.shape_cast %10 : vector<1x1x16x32xf32> to vector<16x32xf32>
    %cst_11 = arith.constant 0.000000e+00 : f32
    %12 = vector.broadcast %cst_11 : f32 to vector<16x32xf32>
    %13 = arith.cmpf ogt, %11, %12 : vector<16x32xf32>
    %cst_12 = arith.constant 1.000000e+00 : f32
    %14 = vector.broadcast %cst_12 : f32 to vector<16x32xf32>
    %15 = arith.addf %11, %14 : vector<16x32xf32>
    %16 = math.exp %11 : vector<16x32xf32>
    %17 = arith.select %13, %15, %16 : vector<16x32xi1>, vector<16x32xf32>
    %18 = vector.broadcast %1 : vector<16x1xf32> to vector<16x32xf32>
    %19 = arith.mulf %17, %18 : vector<16x32xf32>
    %c0_13 = arith.constant 0 : index
    %c0_14 = arith.constant 0 : index
    %c0_15 = arith.constant 0 : index
    %c0_16 = arith.constant 0 : index
    %20 = vector.load %arg4[%c0_13, %c0_14, %c0_15, %c0_16] : memref<1x1x16x128xf32, #tpu.memory_space<vmem>>, vector<1x1x16x32xf32>
    %21 = vector.shape_cast %20 : vector<1x1x16x32xf32> to vector<16x32xf32>
    %cst_17 = arith.constant dense<0.000000e+00> : vector<32xf32>
    %22 = vector.multi_reduction <add>, %19, %cst_17 [0] : vector<16x32xf32> to vector<32xf32>
    %23 = vector.shape_cast %22 : vector<32xf32> to vector<1x32xf32>
    %24 = vector.broadcast %23 : vector<1x32xf32> to vector<16x32xf32>
    %25 = arith.mulf %9, %24 : vector<16x32xf32>
    %cst_18 = arith.constant dense<0.000000e+00> : vector<16xf32>
    %26 = vector.multi_reduction <add>, %25, %cst_18 [1] : vector<16x32xf32> to vector<16xf32>
    %27 = vector.shape_cast %26 : vector<16xf32> to vector<16x1xf32>
    %cst_19 = arith.constant 9.99999997E-7 : f32
    %28 = vector.broadcast %cst_19 : f32 to vector<16x1xf32>
    %29 = arith.addf %27, %28 : vector<16x1xf32>
    %cst_20 = arith.constant 1.000000e+00 : f32
    %30 = vector.broadcast %cst_20 : f32 to vector<16x1xf32>
    %31 = arith.divf %30, %29 : vector<16x1xf32>
    %cst_21 = arith.constant dense<0.000000e+00> : vector<32x32xf32>
    %32 = tpu.matmul %19, %21, %cst_21 {dimension_numbers = #tpu.dot_dimension_numbers<[0], [0], [1], [1], [0, 1, 1, 1], [], []>} : vector<16x32xf32>, vector<16x32xf32>, vector<32x32xf32> -> vector<32x32xf32>
    %cst_22 = arith.constant dense<0.000000e+00> : vector<16x32xf32>
    %33 = tpu.matmul %9, %32, %cst_22 {dimension_numbers = #tpu.dot_dimension_numbers<[1], [0], [0], [1], [0, 0, 1, 1], [], []>} : vector<16x32xf32>, vector<32x32xf32>, vector<16x32xf32> -> vector<16x32xf32>
    %34 = vector.broadcast %31 : vector<16x1xf32> to vector<16x32xf32>
    %35 = arith.mulf %33, %34 : vector<16x32xf32>
    %c0_23 = arith.constant 0 : index
    %c0_24 = arith.constant 0 : index
    %c0_25 = arith.constant 0 : index
    %c0_26 = arith.constant 0 : index
    %36 = vector.load %arg6[%c0_23, %c0_24, %c0_25, %c0_26] : memref<1x1x16x128xf32, #tpu.memory_space<vmem>>, vector<1x1x16x32xf32>
    %37 = vector.shape_cast %36 : vector<1x1x16x32xf32> to vector<16x32xf32>
    %38 = vector.shape_cast %35 : vector<16x32xf32> to vector<1x1x16x32xf32>
    tpu.vector_store %arg6[%c0_23, %c0_24, %c0_25, %c0_26], %38 {strides = array<i32>} : memref<1x1x16x128xf32, #tpu.memory_space<vmem>>, vector<1x1x16x32xf32>,
    %c0_27 = arith.constant 0 : index
    %c0_28 = arith.constant 0 : index
    %c0_29 = arith.constant 0 : index
    %c32 = arith.constant 32 : index
    %39 = vector.load %arg2[%c0_27, %c0_28, %c0_29, %c32] : memref<1x1x16x128xf32, #tpu.memory_space<vmem>>, vector<1x1x16x32xf32>
    %40 = vector.shape_cast %39 : vector<1x1x16x32xf32> to vector<16x32xf32>
    %cst_30 = arith.constant 0.000000e+00 : f32
    %41 = vector.broadcast %cst_30 : f32 to vector<16x32xf32>
    %42 = arith.cmpf ogt, %40, %41 : vector<16x32xf32>
    %cst_31 = arith.constant 1.000000e+00 : f32
    %43 = vector.broadcast %cst_31 : f32 to vector<16x32xf32>
    %44 = arith.addf %40, %43 : vector<16x32xf32>
    %45 = math.exp %40 : vector<16x32xf32>
    %46 = arith.select %42, %44, %45 : vector<16x32xi1>, vector<16x32xf32>
    %c0_32 = arith.constant 0 : index
    %c0_33 = arith.constant 0 : index
    %c0_34 = arith.constant 0 : index
    %c32_35 = arith.constant 32 : index
    %47 = vector.load %arg3[%c0_32, %c0_33, %c0_34, %c32_35] : memref<1x1x16x128xf32, #tpu.memory_space<vmem>>, vector<1x1x16x32xf32>
    %48 = vector.shape_cast %47 : vector<1x1x16x32xf32> to vector<16x32xf32>
    %cst_36 = arith.constant 0.000000e+00 : f32
    %49 = vector.broadcast %cst_36 : f32 to vector<16x32xf32>
    %50 = arith.cmpf ogt, %48, %49 : vector<16x32xf32>
    %cst_37 = arith.constant 1.000000e+00 : f32
    %51 = vector.broadcast %cst_37 : f32 to vector<16x32xf32>
    %52 = arith.addf %48, %51 : vector<16x32xf32>
    %53 = math.exp %48 : vector<16x32xf32>
    %54 = arith.select %50, %52, %53 : vector<16x32xi1>, vector<16x32xf32>
    %55 = vector.broadcast %1 : vector<16x1xf32> to vector<16x32xf32>
    %56 = arith.mulf %54, %55 : vector<16x32xf32>
    %c0_38 = arith.constant 0 : index
    %c0_39 = arith.constant 0 : index
    %c0_40 = arith.constant 0 : index
    %c32_41 = arith.constant 32 : index
    %57 = vector.load %arg4[%c0_38, %c0_39, %c0_40, %c32_41] : memref<1x1x16x128xf32, #tpu.memory_space<vmem>>, vector<1x1x16x32xf32>
    %58 = vector.shape_cast %57 : vector<1x1x16x32xf32> to vector<16x32xf32>
    %cst_42 = arith.constant dense<0.000000e+00> : vector<32xf32>
    %59 = vector.multi_reduction <add>, %56, %cst_42 [0] : vector<16x32xf32> to vector<32xf32>
    %60 = vector.shape_cast %59 : vector<32xf32> to vector<1x32xf32>
    %61 = vector.broadcast %60 : vector<1x32xf32> to vector<16x32xf32>
    %62 = arith.mulf %46, %61 : vector<16x32xf32>
    %cst_43 = arith.constant dense<0.000000e+00> : vector<16xf32>
    %63 = vector.multi_reduction <add>, %62, %cst_43 [1] : vector<16x32xf32> to vector<16xf32>
    %64 = vector.shape_cast %63 : vector<16xf32> to vector<16x1xf32>
    %cst_44 = arith.constant 9.99999997E-7 : f32
    %65 = vector.broadcast %cst_44 : f32 to vector<16x1xf32>
    %66 = arith.addf %64, %65 : vector<16x1xf32>
    %cst_45 = arith.constant 1.000000e+00 : f32
    %67 = vector.broadcast %cst_45 : f32 to vector<16x1xf32>
    %68 = arith.divf %67, %66 : vector<16x1xf32>
    %cst_46 = arith.constant dense<0.000000e+00> : vector<32x32xf32>
    %69 = tpu.matmul %56, %58, %cst_46 {dimension_numbers = #tpu.dot_dimension_numbers<[0], [0], [1], [1], [0, 1, 1, 1], [], []>} : vector<16x32xf32>, vector<16x32xf32>, vector<32x32xf32> -> vector<32x32xf32>
    %cst_47 = arith.constant dense<0.000000e+00> : vector<16x32xf32>
    %70 = tpu.matmul %46, %69, %cst_47 {dimension_numbers = #tpu.dot_dimension_numbers<[1], [0], [0], [1], [0, 0, 1, 1], [], []>} : vector<16x32xf32>, vector<32x32xf32>, vector<16x32xf32> -> vector<16x32xf32>
    %71 = vector.broadcast %68 : vector<16x1xf32> to vector<16x32xf32>
    %72 = arith.mulf %70, %71 : vector<16x32xf32>
    %c0_48 = arith.constant 0 : index
    %c0_49 = arith.constant 0 : index
    %c0_50 = arith.constant 0 : index
    %c32_51 = arith.constant 32 : index
    %73 = vector.load %arg6[%c0_48, %c0_49, %c0_50, %c32_51] : memref<1x1x16x128xf32, #tpu.memory_space<vmem>>, vector<1x1x16x32xf32>
    %74 = vector.shape_cast %73 : vector<1x1x16x32xf32> to vector<16x32xf32>
    %75 = vector.shape_cast %72 : vector<16x32xf32> to vector<1x1x16x32xf32>
    tpu.vector_store %arg6[%c0_48, %c0_49, %c0_50, %c32_51], %75 {strides = array<i32>} : memref<1x1x16x128xf32, #tpu.memory_space<vmem>>, vector<1x1x16x32xf32>,
    %c0_52 = arith.constant 0 : index
    %c0_53 = arith.constant 0 : index
    %c0_54 = arith.constant 0 : index
    %c64 = arith.constant 64 : index
    %76 = vector.load %arg2[%c0_52, %c0_53, %c0_54, %c64] : memref<1x1x16x128xf32, #tpu.memory_space<vmem>>, vector<1x1x16x32xf32>
    %77 = vector.shape_cast %76 : vector<1x1x16x32xf32> to vector<16x32xf32>
    %cst_55 = arith.constant 0.000000e+00 : f32
    %78 = vector.broadcast %cst_55 : f32 to vector<16x32xf32>
    %79 = arith.cmpf ogt, %77, %78 : vector<16x32xf32>
    %cst_56 = arith.constant 1.000000e+00 : f32
    %80 = vector.broadcast %cst_56 : f32 to vector<16x32xf32>
    %81 = arith.addf %77, %80 : vector<16x32xf32>
    %82 = math.exp %77 : vector<16x32xf32>
    %83 = arith.select %79, %81, %82 : vector<16x32xi1>, vector<16x32xf32>
    %c0_57 = arith.constant 0 : index
    %c0_58 = arith.constant 0 : index
    %c0_59 = arith.constant 0 : index
    %c64_60 = arith.constant 64 : index
    %84 = vector.load %arg3[%c0_57, %c0_58, %c0_59, %c64_60] : memref<1x1x16x128xf32, #tpu.memory_space<vmem>>, vector<1x1x16x32xf32>
    %85 = vector.shape_cast %84 : vector<1x1x16x32xf32> to vector<16x32xf32>
    %cst_61 = arith.constant 0.000000e+00 : f32
    %86 = vector.broadcast %cst_61 : f32 to vector<16x32xf32>
    %87 = arith.cmpf ogt, %85, %86 : vector<16x32xf32>
    %cst_62 = arith.constant 1.000000e+00 : f32
    %88 = vector.broadcast %cst_62 : f32 to vector<16x32xf32>
    %89 = arith.addf %85, %88 : vector<16x32xf32>
    %90 = math.exp %85 : vector<16x32xf32>
    %91 = arith.select %87, %89, %90 : vector<16x32xi1>, vector<16x32xf32>
    %92 = vector.broadcast %1 : vector<16x1xf32> to vector<16x32xf32>
    %93 = arith.mulf %91, %92 : vector<16x32xf32>
    %c0_63 = arith.constant 0 : index
    %c0_64 = arith.constant 0 : index
    %c0_65 = arith.constant 0 : index
    %c64_66 = arith.constant 64 : index
    %94 = vector.load %arg4[%c0_63, %c0_64, %c0_65, %c64_66] : memref<1x1x16x128xf32, #tpu.memory_space<vmem>>, vector<1x1x16x32xf32>
    %95 = vector.shape_cast %94 : vector<1x1x16x32xf32> to vector<16x32xf32>
    %cst_67 = arith.constant dense<0.000000e+00> : vector<32xf32>
    %96 = vector.multi_reduction <add>, %93, %cst_67 [0] : vector<16x32xf32> to vector<32xf32>
    %97 = vector.shape_cast %96 : vector<32xf32> to vector<1x32xf32>
    %98 = vector.broadcast %97 : vector<1x32xf32> to vector<16x32xf32>
    %99 = arith.mulf %83, %98 : vector<16x32xf32>
    %cst_68 = arith.constant dense<0.000000e+00> : vector<16xf32>
    %100 = vector.multi_reduction <add>, %99, %cst_68 [1] : vector<16x32xf32> to vector<16xf32>
    %101 = vector.shape_cast %100 : vector<16xf32> to vector<16x1xf32>
    %cst_69 = arith.constant 9.99999997E-7 : f32
    %102 = vector.broadcast %cst_69 : f32 to vector<16x1xf32>
    %103 = arith.addf %101, %102 : vector<16x1xf32>
    %cst_70 = arith.constant 1.000000e+00 : f32
    %104 = vector.broadcast %cst_70 : f32 to vector<16x1xf32>
    %105 = arith.divf %104, %103 : vector<16x1xf32>
    %cst_71 = arith.constant dense<0.000000e+00> : vector<32x32xf32>
    %106 = tpu.matmul %93, %95, %cst_71 {dimension_numbers = #tpu.dot_dimension_numbers<[0], [0], [1], [1], [0, 1, 1, 1], [], []>} : vector<16x32xf32>, vector<16x32xf32>, vector<32x32xf32> -> vector<32x32xf32>
    %cst_72 = arith.constant dense<0.000000e+00> : vector<16x32xf32>
    %107 = tpu.matmul %83, %106, %cst_72 {dimension_numbers = #tpu.dot_dimension_numbers<[1], [0], [0], [1], [0, 0, 1, 1], [], []>} : vector<16x32xf32>, vector<32x32xf32>, vector<16x32xf32> -> vector<16x32xf32>
    %108 = vector.broadcast %105 : vector<16x1xf32> to vector<16x32xf32>
    %109 = arith.mulf %107, %108 : vector<16x32xf32>
    %c0_73 = arith.constant 0 : index
    %c0_74 = arith.constant 0 : index
    %c0_75 = arith.constant 0 : index
    %c64_76 = arith.constant 64 : index
    %110 = vector.load %arg6[%c0_73, %c0_74, %c0_75, %c64_76] : memref<1x1x16x128xf32, #tpu.memory_space<vmem>>, vector<1x1x16x32xf32>
    %111 = vector.shape_cast %110 : vector<1x1x16x32xf32> to vector<16x32xf32>
    %112 = vector.shape_cast %109 : vector<16x32xf32> to vector<1x1x16x32xf32>
    tpu.vector_store %arg6[%c0_73, %c0_74, %c0_75, %c64_76], %112 {strides = array<i32>} : memref<1x1x16x128xf32, #tpu.memory_space<vmem>>, vector<1x1x16x32xf32>,
    %c0_77 = arith.constant 0 : index
    %c0_78 = arith.constant 0 : index
    %c0_79 = arith.constant 0 : index
    %c96 = arith.constant 96 : index
    %113 = vector.load %arg2[%c0_77, %c0_78, %c0_79, %c96] : memref<1x1x16x128xf32, #tpu.memory_space<vmem>>, vector<1x1x16x32xf32>
    %114 = vector.shape_cast %113 : vector<1x1x16x32xf32> to vector<16x32xf32>
    %cst_80 = arith.constant 0.000000e+00 : f32
    %115 = vector.broadcast %cst_80 : f32 to vector<16x32xf32>
    %116 = arith.cmpf ogt, %114, %115 : vector<16x32xf32>
    %cst_81 = arith.constant 1.000000e+00 : f32
    %117 = vector.broadcast %cst_81 : f32 to vector<16x32xf32>
    %118 = arith.addf %114, %117 : vector<16x32xf32>
    %119 = math.exp %114 : vector<16x32xf32>
    %120 = arith.select %116, %118, %119 : vector<16x32xi1>, vector<16x32xf32>
    %c0_82 = arith.constant 0 : index
    %c0_83 = arith.constant 0 : index
    %c0_84 = arith.constant 0 : index
    %c96_85 = arith.constant 96 : index
    %121 = vector.load %arg3[%c0_82, %c0_83, %c0_84, %c96_85] : memref<1x1x16x128xf32, #tpu.memory_space<vmem>>, vector<1x1x16x32xf32>
    %122 = vector.shape_cast %121 : vector<1x1x16x32xf32> to vector<16x32xf32>
    %cst_86 = arith.constant 0.000000e+00 : f32
    %123 = vector.broadcast %cst_86 : f32 to vector<16x32xf32>
    %124 = arith.cmpf ogt, %122, %123 : vector<16x32xf32>
    %cst_87 = arith.constant 1.000000e+00 : f32
    %125 = vector.broadcast %cst_87 : f32 to vector<16x32xf32>
    %126 = arith.addf %122, %125 : vector<16x32xf32>
    %127 = math.exp %122 : vector<16x32xf32>
    %128 = arith.select %124, %126, %127 : vector<16x32xi1>, vector<16x32xf32>
    %129 = vector.broadcast %1 : vector<16x1xf32> to vector<16x32xf32>
    %130 = arith.mulf %128, %129 : vector<16x32xf32>
    %c0_88 = arith.constant 0 : index
    %c0_89 = arith.constant 0 : index
    %c0_90 = arith.constant 0 : index
    %c96_91 = arith.constant 96 : index
    %131 = vector.load %arg4[%c0_88, %c0_89, %c0_90, %c96_91] : memref<1x1x16x128xf32, #tpu.memory_space<vmem>>, vector<1x1x16x32xf32>
    %132 = vector.shape_cast %131 : vector<1x1x16x32xf32> to vector<16x32xf32>
    %cst_92 = arith.constant dense<0.000000e+00> : vector<32xf32>
    %133 = vector.multi_reduction <add>, %130, %cst_92 [0] : vector<16x32xf32> to vector<32xf32>
    %134 = vector.shape_cast %133 : vector<32xf32> to vector<1x32xf32>
    %135 = vector.broadcast %134 : vector<1x32xf32> to vector<16x32xf32>
    %136 = arith.mulf %120, %135 : vector<16x32xf32>
    %cst_93 = arith.constant dense<0.000000e+00> : vector<16xf32>
    %137 = vector.multi_reduction <add>, %136, %cst_93 [1] : vector<16x32xf32> to vector<16xf32>
    %138 = vector.shape_cast %137 : vector<16xf32> to vector<16x1xf32>
    %cst_94 = arith.constant 9.99999997E-7 : f32
    %139 = vector.broadcast %cst_94 : f32 to vector<16x1xf32>
    %140 = arith.addf %138, %139 : vector<16x1xf32>
    %cst_95 = arith.constant 1.000000e+00 : f32
    %141 = vector.broadcast %cst_95 : f32 to vector<16x1xf32>
    %142 = arith.divf %141, %140 : vector<16x1xf32>
    %cst_96 = arith.constant dense<0.000000e+00> : vector<32x32xf32>
    %143 = tpu.matmul %130, %132, %cst_96 {dimension_numbers = #tpu.dot_dimension_numbers<[0], [0], [1], [1], [0, 1, 1, 1], [], []>} : vector<16x32xf32>, vector<16x32xf32>, vector<32x32xf32> -> vector<32x32xf32>
    %cst_97 = arith.constant dense<0.000000e+00> : vector<16x32xf32>
    %144 = tpu.matmul %120, %143, %cst_97 {dimension_numbers = #tpu.dot_dimension_numbers<[1], [0], [0], [1], [0, 0, 1, 1], [], []>} : vector<16x32xf32>, vector<32x32xf32>, vector<16x32xf32> -> vector<16x32xf32>
    %145 = vector.broadcast %142 : vector<16x1xf32> to vector<16x32xf32>
    %146 = arith.mulf %144, %145 : vector<16x32xf32>
    %c0_98 = arith.constant 0 : index
    %c0_99 = arith.constant 0 : index
    %c0_100 = arith.constant 0 : index
    %c96_101 = arith.constant 96 : index
    %147 = vector.load %arg6[%c0_98, %c0_99, %c0_100, %c96_101] : memref<1x1x16x128xf32, #tpu.memory_space<vmem>>, vector<1x1x16x32xf32>
    %148 = vector.shape_cast %147 : vector<1x1x16x32xf32> to vector<16x32xf32>
    %149 = vector.shape_cast %146 : vector<16x32xf32> to vector<1x1x16x32xf32>
    tpu.vector_store %arg6[%c0_98, %c0_99, %c0_100, %c96_101], %149 {strides = array<i32>} : memref<1x1x16x128xf32, #tpu.memory_space<vmem>>, vector<1x1x16x32xf32>,
    return
  }
  func.func @transform_0(%arg0: i32, %arg1: i32) -> (i32, i32, i32, i32) {
    %c0_i32 = arith.constant 0 : i32
    %c0_i32_0 = arith.constant 0 : i32
    %c0_i32_1 = arith.constant 0 : i32
    return %arg0, %arg1, %c0_i32, %c0_i32_0 : i32, i32, i32, i32
  }
  func.func @transform_1(%arg0: i32, %arg1: i32) -> (i32, i32, i32, i32) {
    %c0_i32 = arith.constant 0 : i32
    %c0_i32_0 = arith.constant 0 : i32
    %c0_i32_1 = arith.constant 0 : i32
    return %arg0, %arg1, %c0_i32, %c0_i32_0 : i32, i32, i32, i32
  }
  func.func @transform_2(%arg0: i32, %arg1: i32) -> (i32, i32, i32, i32) {
    %c0_i32 = arith.constant 0 : i32
    %c0_i32_0 = arith.constant 0 : i32
    %c0_i32_1 = arith.constant 0 : i32
    return %arg0, %arg1, %c0_i32, %c0_i32_0 : i32, i32, i32, i32
  }
  func.func @transform_3(%arg0: i32, %arg1: i32) -> (i32, i32, i32) {
    %c0_i32 = arith.constant 0 : i32
    %c0_i32_0 = arith.constant 0 : i32
    %c0_i32_1 = arith.constant 0 : i32
    return %arg0, %c0_i32, %c0_i32_0 : i32, i32, i32
  }
  func.func @transform_4(%arg0: i32, %arg1: i32) -> (i32, i32, i32, i32) {
    %c0_i32 = arith.constant 0 : i32
    %c0_i32_0 = arith.constant 0 : i32
    %c0_i32_1 = arith.constant 0 : i32
    return %arg0, %arg1, %c0_i32, %c0_i32_0 : i32, i32, i32, i32
  }
}

</mosaic_0001>

<llo_original>
// kernel: tpu_custom_call.1
$region0: #{tpu_custom_call.1}
  #allocation0 [shape = 'u32[]', space=smem, size = 0x4, offset = 0x4, fixed_abs, tag = 'smem constant byte address 0x4 - core index']
  #allocation1 [shape = 'u32[144,128]{1,0:T(1,128)}', space=vmem, size = 0x12000, scoped, tag = 'internal scratch']
  %s0 = inlined_call_operand.hbm [shape: f32[2,3,16,128], index: 0, kind: input, shape index: {}]
  %s1 = inlined_call_operand.hbm [shape: f32[2,3,16,128], index: 1, kind: input, shape index: {}]
  %s2 = inlined_call_operand.hbm [shape: f32[2,3,16,128], index: 2, kind: input, shape index: {}]
  %s3 = inlined_call_operand.vmem [shape: f32[2,16,1], index: 3, kind: input, shape index: {}]
  %s4 = inlined_call_operand.hbm [shape: f32[2,3,16,128], index: 4, kind: output, shape index: {}]
  %s5 = sld [smem:[#allocation0]]
  $region61: #{tpu_custom_call.1} parent=0
    _
  %s7 = ssub.s32 1, %s5
  %s8 = scalar_select 0, %s7, %s5
  $region1: #{tpu_custom_call.1} parent=0
    #allocation2 [shape = 'u8[16384]{0}', space=vmem, size = 0x4000, scoped, tag = 'input window, operand 0']
    #allocation3 [shape = 's32[2]{0}', space=sflag, size = 0x8, scoped, tag = 'scoped memory for tpu_custom_call.1']
    #allocation4 [shape = 's32[2]{0}', space=sflag, size = 0x8, scoped, tag = 'scoped memory for tpu_custom_call.1']
    #allocation5 [shape = 'u8[16384]{0}', space=vmem, size = 0x4000, scoped, tag = 'input window, operand 1']
    #allocation6 [shape = 's32[2]{0}', space=sflag, size = 0x8, scoped, tag = 'scoped memory for tpu_custom_call.1']
    #allocation7 [shape = 'u8[16384]{0}', space=vmem, size = 0x4000, scoped, tag = 'input window, operand 2']
    #allocation8 [shape = 'u8[16384]{0}', space=vmem, size = 0x4000, scoped, tag = 'output window, operand 0']
    %9 = vsyncpa [#allocation3], 0
    %s10 = scalar_lea.sflag [#allocation3], 1
    %11 = vsyncpa %s10, 0
    %12 = vsyncpa [#allocation6], 0
    %s13 = scalar_lea.sflag [#allocation6], 1
    %14 = vsyncpa %s13, 0
    %15 = vsyncpa [#allocation4], 0
    %s16 = scalar_lea.sflag [#allocation4], 1
    %17 = vsyncpa %s16, 0
    loop: start=0, step=1, limit=8
    $region2: #{tpu_custom_call.1} parent=1 // loop_pre_header
      _
    $region3: #{tpu_custom_call.1} parent=1 // loop_header
      %s19 = sphi 0, %s23
      %p20 = scmp.ge.s32.totalorder %s19, 8
      %s26 = sphi 0, %s38
      %s27 = sphi 0, %s34
      %s28 = sphi 0, %s26
      %s29 = sphi 0, %s27
      %s30 = sphi 0, %s28
      %s31 = sphi 0, %s29
      %s43 = sphi 0, %s45
      %s46 = sphi 0, %s43
      %s47 = sphi 0, %s46
      %s63 = sphi 0, %s47
      %s71 = sphi 0, %s73
      %s74 = sphi 0, %s71
      %s75 = sphi 0, %s74
      %s91 = sphi 0, %s75
      %s99 = sphi 0, %s101
      %s102 = sphi 0, %s99
      %s103 = sphi 0, %s102
      %s119 = sphi 0, %s103
      %s125 = sphi 0, %s127
      %s128 = sphi 0, %s125
      %s129 = sphi 0, %s128
      %s145 = sphi 0, %s129
      %s153 = sphi 0, %s155
      %s156 = sphi 0, %s153
      %s157 = sphi 0, %s156
      %s173 = sphi 0, %s157
    $region4: #{tpu_custom_call.1} parent=1 // loop_header_branch
      %22 = sbr.rel (%p20) target = $region8
    $region5: #{tpu_custom_call.1} parent=1 // loop_body
      %s24 = ssub.s32 %s19, 1
      %s25 = ssub.s32 %s19, 2
      %s32 = sadd.s32 1, %s27
      %p33 = scmp.ge.s32.totalorder %s32, 3
      %s34 = scalar_select %p33, 0, %s32
      %s35 = sadd.s32 1, %s26
      %s36 = scalar_select %p33, %s35, %s26
      %p37 = scmp.ge.s32.totalorder %s36, 2
      %s38 = scalar_select %p37, 0, %s36
      %s39 = ssub.s32 %s26, %s38
      %s40 = ssub.s32 %s27, %s34
      %s41 = sor.u32 %s39, %s40
      %p42 = scmp.eq.s32.totalorder %s41, 0
      %s44 = sadd.s32 %s43, 1
      %s45 = scalar_select %p42, %s43, %s44
      %p48 = pneg %p42
      %p49 = scmp.eq.s32.totalorder %s19, 5
      %p50 = por %p48, %p49
      %p51 = scmp.ne.s32.totalorder %s43, %s46
      %p52 = scmp.eq.s32.totalorder %s19, 0
      %p53 = por %p51, %p52
      %p54 = scmp.ne.s32.totalorder %s43, %s46
      %p55 = scmp.eq.s32.totalorder %s24, 5
      %p56 = por %p54, %p55
      %p57 = scmp.ne.s32.totalorder %s46, %s47
      %p58 = scmp.eq.s32.totalorder %s24, 0
      %p59 = por %p57, %p58
      %p60 = scmp.ne.s32.totalorder %s46, %s47
      %p61 = scmp.eq.s32.totalorder %s25, 5
      %p62 = por %p60, %p61
      %p64 = scmp.ne.s32.totalorder %s47, %s63
      %p65 = scmp.eq.s32.totalorder %s25, 0
      %p66 = por %p64, %p65
      %s67 = ssub.s32 %s26, %s38
      %s68 = ssub.s32 %s27, %s34
      %s69 = sor.u32 %s67, %s68
      %p70 = scmp.eq.s32.totalorder %s69, 0
      %s72 = sadd.s32 %s71, 1
      %s73 = scalar_select %p70, %s71, %s72
      %p76 = pneg %p70
      %p77 = scmp.eq.s32.totalorder %s19, 5
      %p78 = por %p76, %p77
      %p79 = scmp.ne.s32.totalorder %s71, %s74
      %p80 = scmp.eq.s32.totalorder %s19, 0
      %p81 = por %p79, %p80
      %p82 = scmp.ne.s32.totalorder %s71, %s74
      %p83 = scmp.eq.s32.totalorder %s24, 5
      %p84 = por %p82, %p83
      %p85 = scmp.ne.s32.totalorder %s74, %s75
      %p86 = scmp.eq.s32.totalorder %s24, 0
      %p87 = por %p85, %p86
      %p88 = scmp.ne.s32.totalorder %s74, %s75
      %p89 = scmp.eq.s32.totalorder %s25, 5
      %p90 = por %p88, %p89
      %p92 = scmp.ne.s32.totalorder %s75, %s91
      %p93 = scmp.eq.s32.totalorder %s25, 0
      %p94 = por %p92, %p93
      %s95 = ssub.s32 %s26, %s38
      %s96 = ssub.s32 %s27, %s34
      %s97 = sor.u32 %s95, %s96
      %p98 = scmp.eq.s32.totalorder %s97, 0
      %s100 = sadd.s32 %s99, 1
      %s101 = scalar_select %p98, %s99, %s100
      %p104 = pneg %p98
      %p105 = scmp.eq.s32.totalorder %s19, 5
      %p106 = por %p104, %p105
      %p107 = scmp.ne.s32.totalorder %s99, %s102
      %p108 = scmp.eq.s32.totalorder %s19, 0
      %p109 = por %p107, %p108
      %p110 = scmp.ne.s32.totalorder %s99, %s102
      %p111 = scmp.eq.s32.totalorder %s24, 5
      %p112 = por %p110, %p111
      %p113 = scmp.ne.s32.totalorder %s102, %s103
      %p114 = scmp.eq.s32.totalorder %s24, 0
      %p115 = por %p113, %p114
      %p116 = scmp.ne.s32.totalorder %s102, %s103
      %p117 = scmp.eq.s32.totalorder %s25, 5
      %p118 = por %p116, %p117
      %p120 = scmp.ne.s32.totalorder %s103, %s119
      %p121 = scmp.eq.s32.totalorder %s25, 0
      %p122 = por %p120, %p121
      %s123 = ssub.s32 %s26, %s38
      %p124 = scmp.eq.s32.totalorder %s123, 0
      %s126 = sadd.s32 %s125, 1
      %s127 = scalar_select %p124, %s125, %s126
      %p130 = pneg %p124
      %p131 = scmp.eq.s32.totalorder %s19, 5
      %p132 = por %p130, %p131
      %p133 = scmp.ne.s32.totalorder %s125, %s128
      %p134 = scmp.eq.s32.totalorder %s19, 0
      %p135 = por %p133, %p134
      %p136 = scmp.ne.s32.totalorder %s125, %s128
      %p137 = scmp.eq.s32.totalorder %s24, 5
      %p138 = por %p136, %p137
      %p139 = scmp.ne.s32.totalorder %s128, %s129
      %p140 = scmp.eq.s32.totalorder %s24, 0
      %p141 = por %p139, %p140
      %p142 = scmp.ne.s32.totalorder %s128, %s129
      %p143 = scmp.eq.s32.totalorder %s25, 5
      %p144 = por %p142, %p143
      %p146 = scmp.ne.s32.totalorder %s129, %s145
      %p147 = scmp.eq.s32.totalorder %s25, 0
      %p148 = por %p146, %p147
      %s149 = ssub.s32 %s26, %s38
      %s150 = ssub.s32 %s27, %s34
      %s151 = sor.u32 %s149, %s150
      %p152 = scmp.eq.s32.totalorder %s151, 0
      %s154 = sadd.s32 %s153, 1
      %s155 = scalar_select %p152, %s153, %s154
      %p158 = pneg %p152
      %p159 = scmp.eq.s32.totalorder %s19, 5
      %p160 = por %p158, %p159
      %p161 = scmp.ne.s32.totalorder %s153, %s156
      %p162 = scmp.eq.s32.totalorder %s19, 0
      %p163 = por %p161, %p162
      %p164 = scmp.ne.s32.totalorder %s153, %s156
      %p165 = scmp.eq.s32.totalorder %s24, 5
      %p166 = por %p164, %p165
      %p167 = scmp.ne.s32.totalorder %s156, %s157
      %p168 = scmp.eq.s32.totalorder %s24, 0
      %p169 = por %p167, %p168
      %p170 = scmp.ne.s32.totalorder %s156, %s157
      %p171 = scmp.eq.s32.totalorder %s25, 5
      %p172 = por %p170, %p171
      %p174 = scmp.ne.s32.totalorder %s157, %s173
      %p175 = scmp.eq.s32.totalorder %s25, 0
      %p176 = por %p174, %p175
      %p177 = scmp.le.s32.totalorder 1, %s19
      %p178 = scmp.lt.s32.totalorder %s19, 7
      %p179 = pnand %p177, %p178
      %p180 = pneg %p179
      // Predicated region
      $region9: #{tpu_custom_call.1} parent=5 // pred_check
        _
      $region10: #{tpu_custom_call.1} parent=5 // pred_check_branch
        %182 = sbr.rel (%p179) target = $region12
      $region11: #{tpu_custom_call.1} parent=5 // pred_region
        %s183 = ssub.s32 %s19, 1
      $region12: #{tpu_custom_call.1} parent=5 // pred_fallthru
        _
      %p184 = scmp.lt.s32.totalorder %s19, 6
      // Predicated region
      $region13: #{tpu_custom_call.1} parent=5 // pred_check
        %p185 = pneg %p184
      $region14: #{tpu_custom_call.1} parent=5 // pred_check_branch
        %187 = sbr.rel (%p185) target = $region16
      $region15: #{tpu_custom_call.1} parent=5 // pred_region
        // Predicated region
        $region17: #{tpu_custom_call.1} parent=15 // pred_check
          %p188 = pneg %p53
        $region18: #{tpu_custom_call.1} parent=15 // pred_check_branch
          %190 = sbr.rel (%p188) target = $region20
        $region19: #{tpu_custom_call.1} parent=15 // pred_region
          %s191 = sand.u32 %s43, 1
          %s192 = scalar_lea.sflag [#allocation3], %s191
          %s193 = sand.u32 %s43, 1
          %s194 = smul.addr %s193, 16
          %s195 = scalar_lea.vmem [#allocation2], %s194
          %s197 = ssub.s32 256, 256
          %198 = vsyncadd %s192, %s197
          %s199 = smul.addr %s27, 2
          %s200 = smul.addr %s26, 6
          %s201 = sadd.s32 %s199, %s200
          %s202 = smul.addr %s201, 128
          %s203 = scalar_lea.hbm %s0, %s202
          %s204 = sshll.u32 %s195, 4
          %s205 = int_to_ptr.vmem [resolvable:$true] %s204
          %210 = dma.hbm_to_vmem [thread:$0]  %s203, 256, %s205, %s192, 128, 128, 8
        $region20: #{tpu_custom_call.1} parent=15 // pred_fallthru
          _
        // Predicated region
        $region21: #{tpu_custom_call.1} parent=15 // pred_check
          %p211 = pneg %p81
        $region22: #{tpu_custom_call.1} parent=15 // pred_check_branch
          %213 = sbr.rel (%p211) target = $region24
        $region23: #{tpu_custom_call.1} parent=15 // pred_region
          %s214 = sand.u32 %s19, 1
          %s215 = scalar_lea.sflag [#allocation6], %s214
          %s216 = sand.u32 %s71, 1
          %s217 = smul.addr %s216, 16
          %s218 = scalar_lea.vmem [#allocation5], %s217
          %s220 = ssub.s32 256, 256
          %221 = vsyncadd %s215, %s220
          %s222 = smul.addr %s27, 2
          %s223 = smul.addr %s26, 6
          %s224 = sadd.s32 %s222, %s223
          %s225 = smul.addr %s224, 128
          %s226 = scalar_lea.hbm %s1, %s225
          %s227 = sshll.u32 %s218, 4
          %s228 = int_to_ptr.vmem [resolvable:$true] %s227
          %233 = dma.hbm_to_vmem [thread:$0]  %s226, 256, %s228, %s215, 128, 128, 8
        $region24: #{tpu_custom_call.1} parent=15 // pred_fallthru
          _
        // Predicated region
        $region25: #{tpu_custom_call.1} parent=15 // pred_check
          %p234 = pneg %p109
        $region26: #{tpu_custom_call.1} parent=15 // pred_check_branch
          %236 = sbr.rel (%p234) target = $region28
        $region27: #{tpu_custom_call.1} parent=15 // pred_region
          %s237 = sand.u32 %s19, 1
          %s238 = scalar_lea.sflag [#allocation6], %s237
          %s239 = sand.u32 %s99, 1
          %s240 = smul.addr %s239, 16
          %s241 = scalar_lea.vmem [#allocation7], %s240
          %s243 = ssub.s32 256, 256
          %244 = vsyncadd %s238, %s243
          %s245 = smul.addr %s27, 2
          %s246 = smul.addr %s26, 6
          %s247 = sadd.s32 %s245, %s246
          %s248 = smul.addr %s247, 128
          %s249 = scalar_lea.hbm %s2, %s248
          %s250 = sshll.u32 %s241, 4
          %s251 = int_to_ptr.vmem [resolvable:$true] %s250
          %256 = dma.hbm_to_vmem [thread:$0]  %s249, 256, %s251, %s238, 128, 128, 8
        $region28: #{tpu_custom_call.1} parent=15 // pred_fallthru
          _
        // Predicated region
        $region29: #{tpu_custom_call.1} parent=15 // pred_check
          %p257 = pneg %p135
        $region30: #{tpu_custom_call.1} parent=15 // pred_check_branch
          %259 = sbr.rel (%p257) target = $region32
        $region31: #{tpu_custom_call.1} parent=15 // pred_region
          %p260 = scmp.lt.s32.totalorder %s26, 1
          %s261 = scalar_select %p260, %s26, 1
          %s262 = smul.addr %s261, 2
          %s263 = smul.addr %s262, 8
          %s264 = scalar_lea.vmem %s3, %s263
        $region32: #{tpu_custom_call.1} parent=15 // pred_fallthru
          _
      $region16: #{tpu_custom_call.1} parent=5 // pred_fallthru
        _
      %p265 = scmp.le.s32.totalorder 1, %s19
      %p266 = scmp.lt.s32.totalorder %s19, 7
      %p267 = pnand %p265, %p266
      %p268 = pneg %p267
      // Predicated region
      $region33: #{tpu_custom_call.1} parent=5 // pred_check
        _
      $region34: #{tpu_custom_call.1} parent=5 // pred_check_branch
        %270 = sbr.rel (%p267) target = $region36
      $region35: #{tpu_custom_call.1} parent=5 // pred_region
        %s271 = ssub.s32 %s19, 1
        %s272 = sand.u32 %s46, 1
        %s273 = scalar_lea.sflag [#allocation3], %s272
        %s274 = sand.u32 %s46, 1
        %s275 = smul.addr %s274, 16
        %s276 = scalar_lea.vmem [#allocation2], %s275
        // Predicated region
        $region37: #{tpu_custom_call.1} parent=35 // pred_check
          %p277 = pneg %p59
        $region38: #{tpu_custom_call.1} parent=35 // pred_check_branch
          %279 = sbr.rel (%p277) target = $region40
        $region39: #{tpu_custom_call.1} parent=35 // pred_region
          %280 = dma.done %s273, 256
        $region40: #{tpu_custom_call.1} parent=35 // pred_fallthru
          _
        %s281 = sand.u32 %s24, 1
        %s282 = scalar_lea.sflag [#allocation6], %s281
        %s283 = sand.u32 %s74, 1
        %s284 = smul.addr %s283, 16
        %s285 = scalar_lea.vmem [#allocation5], %s284
        // Predicated region
        $region41: #{tpu_custom_call.1} parent=35 // pred_check
          %p286 = pneg %p87
        $region42: #{tpu_custom_call.1} parent=35 // pred_check_branch
          %288 = sbr.rel (%p286) target = $region44
        $region43: #{tpu_custom_call.1} parent=35 // pred_region
          %289 = dma.done %s282, 256
        $region44: #{tpu_custom_call.1} parent=35 // pred_fallthru
          _
        %s290 = sand.u32 %s24, 1
        %s291 = scalar_lea.sflag [#allocation6], %s290
        %s292 = sand.u32 %s102, 1
        %s293 = smul.addr %s292, 16
        %s294 = scalar_lea.vmem [#allocation7], %s293
        // Predicated region
        $region45: #{tpu_custom_call.1} parent=35 // pred_check
          %p295 = pneg %p115
        $region46: #{tpu_custom_call.1} parent=35 // pred_check_branch
          %297 = sbr.rel (%p295) target = $region48
        $region47: #{tpu_custom_call.1} parent=35 // pred_region
          %298 = dma.done %s291, 256
        $region48: #{tpu_custom_call.1} parent=35 // pred_fallthru
          _
        %s299 = sand.u32 %s46, 1
        %s300 = scalar_lea.sflag [#allocation3], %s299
        %s301 = sand.u32 %s46, 1
        %s302 = smul.addr %s301, 16
        %s303 = scalar_lea.vmem [#allocation2], %s302
        %p304 = pneg %p59
        %p305 = pneg %p56
        %s306 = sand.u32 %s24, 1
        %s307 = scalar_lea.sflag [#allocation6], %s306
        %s308 = sand.u32 %s74, 1
        %s309 = smul.addr %s308, 16
        %s310 = scalar_lea.vmem [#allocation5], %s309
        %p311 = pneg %p87
        %p312 = pneg %p84
        %s313 = sand.u32 %s24, 1
        %s314 = scalar_lea.sflag [#allocation6], %s313
        %s315 = sand.u32 %s102, 1
        %s316 = smul.addr %s315, 16
        %s317 = scalar_lea.vmem [#allocation7], %s316
        %p318 = pneg %p115
        %p319 = pneg %p112
        %p320 = scmp.lt.s32.totalorder %s28, 1
        %s321 = scalar_select %p320, %s28, 1
        %s322 = smul.addr %s321, 2
        %s323 = smul.addr %s322, 8
        %s324 = scalar_lea.vmem %s3, %s323
        %p325 = pneg %p141
        %p326 = pneg %p138
        %p327 = pneg %p169
        %p328 = pneg %p166
        %s329 = sand.u32 %s156, 1
        %s330 = scalar_lea.sflag [#allocation4], %s329
        %s331 = sand.u32 %s156, 1
        %s332 = smul.addr %s331, 16
        %s333 = scalar_lea.vmem [#allocation8], %s332
        %p334 = scmp.lt.s32.totalorder %s28, 1
        %s335 = scalar_select %p334, %s28, 1
        %s336 = smul.addr %s335, 2
        %s337 = smul.addr %s336, 8
        %s338 = scalar_lea.vmem %s3, %s337
        %v339 = vld [vmem:[%s338] sm:$0xff]
        %v340 = vld [vmem:[%s338 + $0x8] sm:$0xff]
        %v341 = vld [vmem:[%s276] sm:$0xff]
        %v342 = vld [vmem:[%s276 + $0x8] sm:$0xff]
        %vm343 = vcmp.gt.f32.partialorder %v341, 0.0
        %vm344 = vcmp.gt.f32.partialorder %v342, 0.0
        %v345 = vadd.f32 %v341, 1.0
        %v346 = vadd.f32 %v342, 1.0
        %v347 = vmul.f32 %v341, 1.442695
        %v348 = vpow.pop %v347
        %v349 = vmul.f32 %v342, 1.442695
        %v350 = vpow.pop %v349
        %v351 = vsel %vm343, %v345, %v348
        %v352 = vsel %vm344, %v346, %v350
        %v353 = vld [vmem:[%s285] sm:$0xff]
        %v354 = vld [vmem:[%s285 + $0x8] sm:$0xff]
        %vm355 = vcmp.gt.f32.partialorder %v353, 0.0
        %vm356 = vcmp.gt.f32.partialorder %v354, 0.0
        %v357 = vadd.f32 %v353, 1.0
        %v358 = vadd.f32 %v354, 1.0
        %v359 = vmul.f32 %v353, 1.442695
        %v360 = vpow.pop %v359
        %v361 = vmul.f32 %v354, 1.442695
        %v362 = vpow.pop %v361
        %v363 = vsel %vm355, %v357, %v360
        %v364 = vsel %vm356, %v358, %v362
        %366 = vset.pattern.permute.xlu0 0
        %367 = vperm.xlu0 %366, %v339
        %v368 = vpop.permute.xlu0 %367
        %371 = vset.pattern.permute.xlu0 0
        %372 = vperm.xlu0 %371, %v340
        %v373 = vpop.permute.xlu0 %372
        %v375 = vmul.f32 %v363, %v368
        %v376 = vmul.f32 %v364, %v373
        %v377 = vld [vmem:[%s294] sm:$0xff]
        %v378 = vld [vmem:[%s294 + $0x8] sm:$0xff]
        %vm379 = vcmask 261120
        %v380 = vsel %vm379, %v375, 0.0
        %v381 = vsel %vm379, %v376, 0.0
        %v382 = vadd.f32 %v380, %v381
        %v383 = vrot.slane %v382, 4
        %v384 = vadd.f32 %v382, %v383
        %v385 = vrot.slane %v384, 2
        %v386 = vadd.f32 %v384, %v385
        %v387 = vrot.slane %v386, 1
        %v388 = vadd.f32 %v386, %v387
        %v389 = vmul.f32 %v351, %v388
        %v390 = vmul.f32 %v352, %v388
        %v391 = vsel %vm379, %v389, 0.0
        %392 = vadd.xlane.f32.xlu0 %v391
        %v393 = vpop.xlane.xlu0 %392
        %v394 = vsel %vm379, %v390, 0.0
        %395 = vadd.xlane.f32.xlu0 %v394
        %v396 = vpop.xlane.xlu0 %395
        %v397 = vadd.f32 %v393, 1e-06
        %v398 = vadd.f32 %v396, 1e-06
        %v399 = vrcp.pop %v397
        %v400 = vmul.f32 1.0, %v399
        %v401 = vrcp.pop %v398
        %v402 = vmul.f32 1.0, %v401
        %403 = vxpose.xlu0.b32.start [1/16] %v375, 128
        %404 = vxpose.xlu0.b32.cont [2/16] %v376, 128
        %405 = vxpose.xlu0.b32.cont [3/16] 0.0, 128
        %406 = vxpose.xlu0.b32.cont [4/16] 0.0, 128
        %407 = vxpose.xlu0.b32.cont [5/16] 0.0, 128
        %408 = vxpose.xlu0.b32.cont [6/16] 0.0, 128
        %409 = vxpose.xlu0.b32.cont [7/16] 0.0, 128
        %410 = vxpose.xlu0.b32.cont [8/16] 0.0, 128
        %411 = vxpose.xlu0.b32.cont [9/16] 0.0, 128
        %412 = vxpose.xlu0.b32.cont [10/16] 0.0, 128
        %413 = vxpose.xlu0.b32.cont [11/16] 0.0, 128
        %414 = vxpose.xlu0.b32.cont [12/16] 0.0, 128
        %415 = vxpose.xlu0.b32.cont [13/16] 0.0, 128
        %416 = vxpose.xlu0.b32.cont [14/16] 0.0, 128
        %417 = vxpose.xlu0.b32.cont [15/16] 0.0, 128
        %418 = vxpose.xlu0.b32.end [16/16] 0.0, 128
        %v419 = vpop.trf.xlu0
        %v420 = vpop.trf.xlu0
        %v421 = vpop.trf.xlu0
        %v422 = vpop.trf.xlu0
        %v423 = vpop.trf.xlu0
        %v424 = vpop.trf.xlu0
        %v425 = vpop.trf.xlu0
        %v426 = vpop.trf.xlu0
        %v427 = vpop.trf.xlu0
        %v428 = vpop.trf.xlu0
        %v429 = vpop.trf.xlu0
        %v430 = vpop.trf.xlu0
        %v431 = vpop.trf.xlu0
        %v432 = vpop.trf.xlu0
        %v433 = vpop.trf.xlu0
        %v434 = vpop.trf.xlu0
        %vm435 = vcmask 130048
        %v437 = vsel %vm435, %v419, 0
        %v440 = vsel %vm435, %v420, 0
        %v443 = vsel %vm435, %v421, 0
        %v446 = vsel %vm435, %v422, 0
        %448 = vmatprep.subr.mxu0 0.0
        %449 = vmatpush1.msra.mxu0 0.0
        %450 = vmatprep.subr.mxu0 0.0
        %451 = vmatpush1.msra.mxu0 0.0
        %452 = vmatprep.subr.mxu0 0.0
        %453 = vmatpush1.msra.mxu0 0.0
        %454 = vmatprep.subr.mxu0 0.0
        %455 = vmatpush1.msra.mxu0 0.0
        %456 = vmatprep.subr.mxu0 0.0
        %457 = vmatpush1.msra.mxu0 0.0
        %458 = vmatprep.subr.mxu0 0.0
        %459 = vmatpush1.msra.mxu0 0.0
        %460 = vmatprep.subr.mxu0 0.0
        %461 = vmatpush1.msra.mxu0 0.0
        %462 = vmatprep.subr.mxu0 0.0
        %463 = vmatpush1.msra.mxu0 0.0
        %464 = vmatprep.subr.mxu0 0.0
        %465 = vmatpush1.msra.mxu0 0.0
        %466 = vmatprep.subr.mxu0 0.0
        %467 = vmatpush1.msra.mxu0 0.0
        %468 = vmatprep.subr.mxu0 0.0
        %469 = vmatpush1.msra.mxu0 0.0
        %470 = vmatprep.subr.mxu0 0.0
        %471 = vmatpush1.msra.mxu0 0.0
        %472 = vmatprep.subr.mxu0 0.0
        %473 = vmatpush1.msra.mxu0 0.0
        %474 = vmatprep.subr.mxu0 0.0
        %475 = vmatpush1.msra.mxu0 0.0
        %476 = vmatprep.subr.mxu0 0.0
        %477 = vmatpush1.msra.mxu0 %v378
        %478 = vmatprep.subr.mxu0 0.0
        %479 = vmatpush1.msra.mxu0 %v377
        %480 = vmatprep.subr.mxu0 0.0
        %481 = vmatpush2.msra.mxu0 0.0
        %482 = vmatprep.subr.mxu0 0.0
        %483 = vmatpush2.msra.mxu0 0.0
        %484 = vmatprep.subr.mxu0 0.0
        %485 = vmatpush2.msra.mxu0 0.0
        %486 = vmatprep.subr.mxu0 0.0
        %487 = vmatpush2.msra.mxu0 0.0
        %488 = vmatprep.subr.mxu0 0.0
        %489 = vmatpush2.msra.mxu0 0.0
        %490 = vmatprep.subr.mxu0 0.0
        %491 = vmatpush2.msra.mxu0 0.0
        %492 = vmatprep.subr.mxu0 0.0
        %493 = vmatpush2.msra.mxu0 0.0
        %494 = vmatprep.subr.mxu0 0.0
        %495 = vmatpush2.msra.mxu0 0.0
        %496 = vmatprep.subr.mxu0 0.0
        %497 = vmatpush2.msra.mxu0 0.0
        %498 = vmatprep.subr.mxu0 0.0
        %499 = vmatpush2.msra.mxu0 0.0
        %500 = vmatprep.subr.mxu0 0.0
        %501 = vmatpush2.msra.mxu0 0.0
        %502 = vmatprep.subr.mxu0 0.0
        %503 = vmatpush2.msra.mxu0 0.0
        %504 = vmatprep.subr.mxu0 0.0
        %505 = vmatpush2.msra.mxu0 0.0
        %506 = vmatprep.subr.mxu0 0.0
        %507 = vmatpush2.msra.mxu0 0.0
        %508 = vmatprep.subr.mxu0 0.0
        %509 = vmatpush2.msra.mxu0 0.0
        %510 = vmatprep.subr.mxu0 0.0
        %511 = vmatpush2.msra.mxu0 0.0
        %512 = vmatprep.mubr.f32.mxu0 0.0
        %513 = vmatmul.mubr.f32.gmra.mxu0 %v437
        %v514 = vpop.f32.mrf.mxu0
        %v515 = vadd.f32 0.0, %v514
        %v516 = vpop.f32.mrf.mxu0
        %517 = vmatprep.mubr.f32.mxu0 0.0
        %518 = vmatmul.mubr.f32.gmra.mxu0 %v440
        %v519 = vpop.f32.mrf.mxu0
        %v520 = vadd.f32 0.0, %v519
        %v521 = vpop.f32.mrf.mxu0
        %522 = vmatprep.mubr.f32.mxu0 0.0
        %523 = vmatmul.mubr.f32.gmra.mxu0 %v443
        %v524 = vpop.f32.mrf.mxu0
        %v525 = vadd.f32 0.0, %v524
        %v526 = vpop.f32.mrf.mxu0
        %527 = vmatprep.mubr.f32.mxu0 0.0
        %528 = vmatmul.mubr.f32.gmra.mxu0 %v446
        %v529 = vpop.f32.mrf.mxu0
        %v530 = vadd.f32 0.0, %v529
        %v531 = vpop.f32.mrf.mxu0
        %532 = vdwg.mxu0
        %v534 = vsel %vm379, %v351, 0
        %v537 = vsel %vm379, %v352, 0
        %539 = vmatprep.subr.mxu0 0.0
        %540 = vmatpush1.msra.mxu0 0.0
        %541 = vmatprep.subr.mxu0 0.0
        %542 = vmatpush1.msra.mxu0 0.0
        %543 = vmatprep.subr.mxu0 0.0
        %544 = vmatpush1.msra.mxu0 0.0
        %545 = vmatprep.subr.mxu0 0.0
        %546 = vmatpush1.msra.mxu0 0.0
        %547 = vmatprep.subr.mxu0 0.0
        %548 = vmatpush1.msra.mxu0 0.0
        %549 = vmatprep.subr.mxu0 0.0
        %550 = vmatpush1.msra.mxu0 0.0
        %551 = vmatprep.subr.mxu0 0.0
        %552 = vmatpush1.msra.mxu0 0.0
        %553 = vmatprep.subr.mxu0 0.0
        %554 = vmatpush1.msra.mxu0 0.0
        %555 = vmatprep.subr.mxu0 0.0
        %556 = vmatpush1.msra.mxu0 0.0
        %557 = vmatprep.subr.mxu0 0.0
        %558 = vmatpush1.msra.mxu0 0.0
        %559 = vmatprep.subr.mxu0 0.0
        %560 = vmatpush1.msra.mxu0 0.0
        %561 = vmatprep.subr.mxu0 0.0
        %562 = vmatpush1.msra.mxu0 0.0
        %563 = vmatprep.subr.mxu0 0.0
        %564 = vmatpush1.msra.mxu0 %v530
        %565 = vmatprep.subr.mxu0 0.0
        %566 = vmatpush1.msra.mxu0 %v525
        %567 = vmatprep.subr.mxu0 0.0
        %568 = vmatpush1.msra.mxu0 %v520
        %569 = vmatprep.subr.mxu0 0.0
        %570 = vmatpush1.msra.mxu0 %v515
        %571 = vmatprep.subr.mxu0 0.0
        %572 = vmatpush2.msra.mxu0 0.0
        %573 = vmatprep.subr.mxu0 0.0
        %574 = vmatpush2.msra.mxu0 0.0
        %575 = vmatprep.subr.mxu0 0.0
        %576 = vmatpush2.msra.mxu0 0.0
        %577 = vmatprep.subr.mxu0 0.0
        %578 = vmatpush2.msra.mxu0 0.0
        %579 = vmatprep.subr.mxu0 0.0
        %580 = vmatpush2.msra.mxu0 0.0
        %581 = vmatprep.subr.mxu0 0.0
        %582 = vmatpush2.msra.mxu0 0.0
        %583 = vmatprep.subr.mxu0 0.0
        %584 = vmatpush2.msra.mxu0 0.0
        %585 = vmatprep.subr.mxu0 0.0
        %586 = vmatpush2.msra.mxu0 0.0
        %587 = vmatprep.subr.mxu0 0.0
        %588 = vmatpush2.msra.mxu0 0.0
        %589 = vmatprep.subr.mxu0 0.0
        %590 = vmatpush2.msra.mxu0 0.0
        %591 = vmatprep.subr.mxu0 0.0
        %592 = vmatpush2.msra.mxu0 0.0
        %593 = vmatprep.subr.mxu0 0.0
        %594 = vmatpush2.msra.mxu0 0.0
        %595 = vmatprep.subr.mxu0 0.0
        %596 = vmatpush2.msra.mxu0 0.0
        %597 = vmatprep.subr.mxu0 0.0
        %598 = vmatpush2.msra.mxu0 0.0
        %599 = vmatprep.subr.mxu0 0.0
        %600 = vmatpush2.msra.mxu0 0.0
        %601 = vmatprep.subr.mxu0 0.0
        %602 = vmatpush2.msra.mxu0 0.0
        %603 = vmatprep.mubr.f32.mxu0 0.0
        %604 = vmatmul.mubr.f32.gmra.mxu0 %v534
        %v605 = vpop.f32.mrf.mxu0
        %v606 = vadd.f32 0.0, %v605
        %v607 = vpop.f32.mrf.mxu0
        %608 = vmatprep.mubr.f32.mxu0 0.0
        %609 = vmatmul.mubr.f32.gmra.mxu0 %v537
        %v610 = vpop.f32.mrf.mxu0
        %v611 = vadd.f32 0.0, %v610
        %v612 = vpop.f32.mrf.mxu0
        %613 = vdwg.mxu0
        %v614 = vmul.f32 %v606, %v400
        %v615 = vmul.f32 %v611, %v402
        %616 = vst.msk [vmem:[%s333] sm:$0xff] %vm379, %v614
        %617 = vst.msk [vmem:[%s333 + $0x8] sm:$0xff] %vm379, %v615
        %v618 = vld [vmem:[%s276] sm:$0xff]
        %v619 = vld [vmem:[%s276 + $0x8] sm:$0xff]
        %vm620 = vcmp.gt.f32.partialorder %v618, 0.0
        %vm621 = vcmp.gt.f32.partialorder %v619, 0.0
        %v622 = vadd.f32 %v618, 1.0
        %v623 = vadd.f32 %v619, 1.0
        %v624 = vmul.f32 %v618, 1.442695
        %v625 = vpow.pop %v624
        %v626 = vmul.f32 %v619, 1.442695
        %v627 = vpow.pop %v626
        %v628 = vsel %vm620, %v622, %v625
        %v629 = vsel %vm621, %v623, %v627
        %v630 = vld [vmem:[%s285] sm:$0xff]
        %v631 = vld [vmem:[%s285 + $0x8] sm:$0xff]
        %vm632 = vcmp.gt.f32.partialorder %v630, 0.0
        %vm633 = vcmp.gt.f32.partialorder %v631, 0.0
        %v634 = vadd.f32 %v630, 1.0
        %v635 = vadd.f32 %v631, 1.0
        %v636 = vmul.f32 %v630, 1.442695
        %v637 = vpow.pop %v636
        %v638 = vmul.f32 %v631, 1.442695
        %v639 = vpow.pop %v638
        %v640 = vsel %vm632, %v634, %v637
        %v641 = vsel %vm633, %v635, %v639
        %v642 = vmul.f32 %v640, %v368
        %v643 = vmul.f32 %v641, %v373
        %v644 = vld [vmem:[%s294] sm:$0xff]
        %v645 = vld [vmem:[%s294 + $0x8] sm:$0xff]
        %vm646 = vcmask 523520
        %v647 = vsel %vm646, %v642, 0.0
        %v648 = vsel %vm646, %v643, 0.0
        %v649 = vadd.f32 %v647, %v648
        %v650 = vrot.slane %v649, 4
        %v651 = vadd.f32 %v649, %v650
        %v652 = vrot.slane %v651, 2
        %v653 = vadd.f32 %v651, %v652
        %v654 = vrot.slane %v653, 1
        %v655 = vadd.f32 %v653, %v654
        %v656 = vmul.f32 %v628, %v655
        %v657 = vmul.f32 %v629, %v655
        %660 = vrot.lane.b32.xlu0 %v656, 96
        %v661 = vpop.permute.xlu0 %660
        %662 = vrot.lane.b32.xlu0 %v657, 96
        %v663 = vpop.permute.xlu0 %662
        %v666 = vsel %vm379, %v661, 0.0
        %667 = vadd.xlane.f32.xlu0 %v666
        %v668 = vpop.xlane.xlu0 %667
        %v669 = vsel %vm379, %v663, 0.0
        %670 = vadd.xlane.f32.xlu0 %v669
        %v671 = vpop.xlane.xlu0 %670
        %v672 = vadd.f32 %v668, 1e-06
        %v673 = vadd.f32 %v671, 1e-06
        %v674 = vrcp.pop %v672
        %v675 = vmul.f32 1.0, %v674
        %v676 = vrcp.pop %v673
        %v677 = vmul.f32 1.0, %v676
        %680 = vrot.lane.b32.xlu0 %v642, 96
        %v681 = vpop.permute.xlu0 %680
        %682 = vrot.lane.b32.xlu0 %v643, 96
        %v683 = vpop.permute.xlu0 %682
        %686 = vxpose.xlu0.b32.start [1/16] %v681, 128
        %687 = vxpose.xlu0.b32.cont [2/16] %v683, 128
        %688 = vxpose.xlu0.b32.cont [3/16] 0.0, 128
        %689 = vxpose.xlu0.b32.cont [4/16] 0.0, 128
        %690 = vxpose.xlu0.b32.cont [5/16] 0.0, 128
        %691 = vxpose.xlu0.b32.cont [6/16] 0.0, 128
        %692 = vxpose.xlu0.b32.cont [7/16] 0.0, 128
        %693 = vxpose.xlu0.b32.cont [8/16] 0.0, 128
        %694 = vxpose.xlu0.b32.cont [9/16] 0.0, 128
        %695 = vxpose.xlu0.b32.cont [10/16] 0.0, 128
        %696 = vxpose.xlu0.b32.cont [11/16] 0.0, 128
        %697 = vxpose.xlu0.b32.cont [12/16] 0.0, 128
        %698 = vxpose.xlu0.b32.cont [13/16] 0.0, 128
        %699 = vxpose.xlu0.b32.cont [14/16] 0.0, 128
        %700 = vxpose.xlu0.b32.cont [15/16] 0.0, 128
        %701 = vxpose.xlu0.b32.end [16/16] 0.0, 128
        %v702 = vpop.trf.xlu0
        %v703 = vpop.trf.xlu0
        %v704 = vpop.trf.xlu0
        %v705 = vpop.trf.xlu0
        %v706 = vpop.trf.xlu0
        %v707 = vpop.trf.xlu0
        %v708 = vpop.trf.xlu0
        %v709 = vpop.trf.xlu0
        %v710 = vpop.trf.xlu0
        %v711 = vpop.trf.xlu0
        %v712 = vpop.trf.xlu0
        %v713 = vpop.trf.xlu0
        %v714 = vpop.trf.xlu0
        %v715 = vpop.trf.xlu0
        %v716 = vpop.trf.xlu0
        %v717 = vpop.trf.xlu0
        %720 = vrot.lane.b32.xlu0 %v644, 96
        %v721 = vpop.permute.xlu0 %720
        %722 = vrot.lane.b32.xlu0 %v645, 96
        %v723 = vpop.permute.xlu0 %722
        %v727 = vsel %vm435, %v702, 0
        %v730 = vsel %vm435, %v703, 0
        %v733 = vsel %vm435, %v704, 0
        %v736 = vsel %vm435, %v705, 0
        %738 = vmatprep.subr.mxu0 0.0
        %739 = vmatpush1.msra.mxu0 0.0
        %740 = vmatprep.subr.mxu0 0.0
        %741 = vmatpush1.msra.mxu0 0.0
        %742 = vmatprep.subr.mxu0 0.0
        %743 = vmatpush1.msra.mxu0 0.0
        %744 = vmatprep.subr.mxu0 0.0
        %745 = vmatpush1.msra.mxu0 0.0
        %746 = vmatprep.subr.mxu0 0.0
        %747 = vmatpush1.msra.mxu0 0.0
        %748 = vmatprep.subr.mxu0 0.0
        %749 = vmatpush1.msra.mxu0 0.0
        %750 = vmatprep.subr.mxu0 0.0
        %751 = vmatpush1.msra.mxu0 0.0
        %752 = vmatprep.subr.mxu0 0.0
        %753 = vmatpush1.msra.mxu0 0.0
        %754 = vmatprep.subr.mxu0 0.0
        %755 = vmatpush1.msra.mxu0 0.0
        %756 = vmatprep.subr.mxu0 0.0
        %757 = vmatpush1.msra.mxu0 0.0
        %758 = vmatprep.subr.mxu0 0.0
        %759 = vmatpush1.msra.mxu0 0.0
        %760 = vmatprep.subr.mxu0 0.0
        %761 = vmatpush1.msra.mxu0 0.0
        %762 = vmatprep.subr.mxu0 0.0
        %763 = vmatpush1.msra.mxu0 0.0
        %764 = vmatprep.subr.mxu0 0.0
        %765 = vmatpush1.msra.mxu0 0.0
        %766 = vmatprep.subr.mxu0 0.0
        %767 = vmatpush1.msra.mxu0 %v723
        %768 = vmatprep.subr.mxu0 0.0
        %769 = vmatpush1.msra.mxu0 %v721
        %770 = vmatprep.subr.mxu0 0.0
        %771 = vmatpush2.msra.mxu0 0.0
        %772 = vmatprep.subr.mxu0 0.0
        %773 = vmatpush2.msra.mxu0 0.0
        %774 = vmatprep.subr.mxu0 0.0
        %775 = vmatpush2.msra.mxu0 0.0
        %776 = vmatprep.subr.mxu0 0.0
        %777 = vmatpush2.msra.mxu0 0.0
        %778 = vmatprep.subr.mxu0 0.0
        %779 = vmatpush2.msra.mxu0 0.0
        %780 = vmatprep.subr.mxu0 0.0
        %781 = vmatpush2.msra.mxu0 0.0
        %782 = vmatprep.subr.mxu0 0.0
        %783 = vmatpush2.msra.mxu0 0.0
        %784 = vmatprep.subr.mxu0 0.0
        %785 = vmatpush2.msra.mxu0 0.0
        %786 = vmatprep.subr.mxu0 0.0
        %787 = vmatpush2.msra.mxu0 0.0
        %788 = vmatprep.subr.mxu0 0.0
        %789 = vmatpush2.msra.mxu0 0.0
        %790 = vmatprep.subr.mxu0 0.0
        %791 = vmatpush2.msra.mxu0 0.0
        %792 = vmatprep.subr.mxu0 0.0
        %793 = vmatpush2.msra.mxu0 0.0
        %794 = vmatprep.subr.mxu0 0.0
        %795 = vmatpush2.msra.mxu0 0.0
        %796 = vmatprep.subr.mxu0 0.0
        %797 = vmatpush2.msra.mxu0 0.0
        %798 = vmatprep.subr.mxu0 0.0
        %799 = vmatpush2.msra.mxu0 0.0
        %800 = vmatprep.subr.mxu0 0.0
        %801 = vmatpush2.msra.mxu0 0.0
        %802 = vmatprep.mubr.f32.mxu0 0.0
        %803 = vmatmul.mubr.f32.gmra.mxu0 %v727
        %v804 = vpop.f32.mrf.mxu0
        %v805 = vadd.f32 0.0, %v804
        %v806 = vpop.f32.mrf.mxu0
        %807 = vmatprep.mubr.f32.mxu0 0.0
        %808 = vmatmul.mubr.f32.gmra.mxu0 %v730
        %v809 = vpop.f32.mrf.mxu0
        %v810 = vadd.f32 0.0, %v809
        %v811 = vpop.f32.mrf.mxu0
        %812 = vmatprep.mubr.f32.mxu0 0.0
        %813 = vmatmul.mubr.f32.gmra.mxu0 %v733
        %v814 = vpop.f32.mrf.mxu0
        %v815 = vadd.f32 0.0, %v814
        %v816 = vpop.f32.mrf.mxu0
        %817 = vmatprep.mubr.f32.mxu0 0.0
        %818 = vmatmul.mubr.f32.gmra.mxu0 %v736
        %v819 = vpop.f32.mrf.mxu0
        %v820 = vadd.f32 0.0, %v819
        %v821 = vpop.f32.mrf.mxu0
        %822 = vdwg.mxu0
        %825 = vrot.lane.b32.xlu0 %v628, 96
        %v826 = vpop.permute.xlu0 %825
        %827 = vrot.lane.b32.xlu0 %v629, 96
        %v828 = vpop.permute.xlu0 %827
        %v829 = vsel %vm379, %v826, 0
        %v831 = vsel %vm379, %v828, 0
        %833 = vmatprep.subr.mxu0 0.0
        %834 = vmatpush1.msra.mxu0 0.0
        %835 = vmatprep.subr.mxu0 0.0
        %836 = vmatpush1.msra.mxu0 0.0
        %837 = vmatprep.subr.mxu0 0.0
        %838 = vmatpush1.msra.mxu0 0.0
        %839 = vmatprep.subr.mxu0 0.0
        %840 = vmatpush1.msra.mxu0 0.0
        %841 = vmatprep.subr.mxu0 0.0
        %842 = vmatpush1.msra.mxu0 0.0
        %843 = vmatprep.subr.mxu0 0.0
        %844 = vmatpush1.msra.mxu0 0.0
        %845 = vmatprep.subr.mxu0 0.0
        %846 = vmatpush1.msra.mxu0 0.0
        %847 = vmatprep.subr.mxu0 0.0
        %848 = vmatpush1.msra.mxu0 0.0
        %849 = vmatprep.subr.mxu0 0.0
        %850 = vmatpush1.msra.mxu0 0.0
        %851 = vmatprep.subr.mxu0 0.0
        %852 = vmatpush1.msra.mxu0 0.0
        %853 = vmatprep.subr.mxu0 0.0
        %854 = vmatpush1.msra.mxu0 0.0
        %855 = vmatprep.subr.mxu0 0.0
        %856 = vmatpush1.msra.mxu0 0.0
        %857 = vmatprep.subr.mxu0 0.0
        %858 = vmatpush1.msra.mxu0 %v820
        %859 = vmatprep.subr.mxu0 0.0
        %860 = vmatpush1.msra.mxu0 %v815
        %861 = vmatprep.subr.mxu0 0.0
        %862 = vmatpush1.msra.mxu0 %v810
        %863 = vmatprep.subr.mxu0 0.0
        %864 = vmatpush1.msra.mxu0 %v805
        %865 = vmatprep.subr.mxu0 0.0
        %866 = vmatpush2.msra.mxu0 0.0
        %867 = vmatprep.subr.mxu0 0.0
        %868 = vmatpush2.msra.mxu0 0.0
        %869 = vmatprep.subr.mxu0 0.0
        %870 = vmatpush2.msra.mxu0 0.0
        %871 = vmatprep.subr.mxu0 0.0
        %872 = vmatpush2.msra.mxu0 0.0
        %873 = vmatprep.subr.mxu0 0.0
        %874 = vmatpush2.msra.mxu0 0.0
        %875 = vmatprep.subr.mxu0 0.0
        %876 = vmatpush2.msra.mxu0 0.0
        %877 = vmatprep.subr.mxu0 0.0
        %878 = vmatpush2.msra.mxu0 0.0
        %879 = vmatprep.subr.mxu0 0.0
        %880 = vmatpush2.msra.mxu0 0.0
        %881 = vmatprep.subr.mxu0 0.0
        %882 = vmatpush2.msra.mxu0 0.0
        %883 = vmatprep.subr.mxu0 0.0
        %884 = vmatpush2.msra.mxu0 0.0
        %885 = vmatprep.subr.mxu0 0.0
        %886 = vmatpush2.msra.mxu0 0.0
        %887 = vmatprep.subr.mxu0 0.0
        %888 = vmatpush2.msra.mxu0 0.0
        %889 = vmatprep.subr.mxu0 0.0
        %890 = vmatpush2.msra.mxu0 0.0
        %891 = vmatprep.subr.mxu0 0.0
        %892 = vmatpush2.msra.mxu0 0.0
        %893 = vmatprep.subr.mxu0 0.0
        %894 = vmatpush2.msra.mxu0 0.0
        %895 = vmatprep.subr.mxu0 0.0
        %896 = vmatpush2.msra.mxu0 0.0
        %897 = vmatprep.mubr.f32.mxu0 0.0
        %898 = vmatmul.mubr.f32.gmra.mxu0 %v829
        %v899 = vpop.f32.mrf.mxu0
        %v900 = vadd.f32 0.0, %v899
        %v901 = vpop.f32.mrf.mxu0
        %902 = vmatprep.mubr.f32.mxu0 0.0
        %903 = vmatmul.mubr.f32.gmra.mxu0 %v831
        %v904 = vpop.f32.mrf.mxu0
        %v905 = vadd.f32 0.0, %v904
        %v906 = vpop.f32.mrf.mxu0
        %907 = vdwg.mxu0
        %v908 = vmul.f32 %v900, %v675
        %v909 = vmul.f32 %v905, %v677
        %912 = vrot.lane.b32.xlu0 %v908, 32
        %v913 = vpop.permute.xlu0 %912
        %914 = vrot.lane.b32.xlu0 %v909, 32
        %v915 = vpop.permute.xlu0 %914
        %918 = vst.msk [vmem:[%s333] sm:$0xff] %vm646, %v913
        %919 = vst.msk [vmem:[%s333 + $0x8] sm:$0xff] %vm646, %v915
        %v920 = vld [vmem:[%s276] sm:$0xff]
        %v921 = vld [vmem:[%s276 + $0x8] sm:$0xff]
        %vm922 = vcmp.gt.f32.partialorder %v920, 0.0
        %vm923 = vcmp.gt.f32.partialorder %v921, 0.0
        %v924 = vadd.f32 %v920, 1.0
        %v925 = vadd.f32 %v921, 1.0
        %v926 = vmul.f32 %v920, 1.442695
        %v927 = vpow.pop %v926
        %v928 = vmul.f32 %v921, 1.442695
        %v929 = vpow.pop %v928
        %v930 = vsel %vm922, %v924, %v927
        %v931 = vsel %vm923, %v925, %v929
        %v932 = vld [vmem:[%s285] sm:$0xff]
        %v933 = vld [vmem:[%s285 + $0x8] sm:$0xff]
        %vm934 = vcmp.gt.f32.partialorder %v932, 0.0
        %vm935 = vcmp.gt.f32.partialorder %v933, 0.0
        %v936 = vadd.f32 %v932, 1.0
        %v937 = vadd.f32 %v933, 1.0
        %v938 = vmul.f32 %v932, 1.442695
        %v939 = vpow.pop %v938
        %v940 = vmul.f32 %v933, 1.442695
        %v941 = vpow.pop %v940
        %v942 = vsel %vm934, %v936, %v939
        %v943 = vsel %vm935, %v937, %v941
        %v944 = vmul.f32 %v942, %v368
        %v945 = vmul.f32 %v943, %v373
        %v946 = vld [vmem:[%s294] sm:$0xff]
        %v947 = vld [vmem:[%s294 + $0x8] sm:$0xff]
        %vm948 = vcmask 785920
        %v949 = vsel %vm948, %v944, 0.0
        %v950 = vsel %vm948, %v945, 0.0
        %v951 = vadd.f32 %v949, %v950
        %v952 = vrot.slane %v951, 4
        %v953 = vadd.f32 %v951, %v952
        %v954 = vrot.slane %v953, 2
        %v955 = vadd.f32 %v953, %v954
        %v956 = vrot.slane %v955, 1
        %v957 = vadd.f32 %v955, %v956
        %v958 = vmul.f32 %v930, %v957
        %v959 = vmul.f32 %v931, %v957
        %962 = vrot.lane.b32.xlu0 %v958, 64
        %v963 = vpop.permute.xlu0 %962
        %964 = vrot.lane.b32.xlu0 %v959, 64
        %v965 = vpop.permute.xlu0 %964
        %v968 = vsel %vm379, %v963, 0.0
        %969 = vadd.xlane.f32.xlu0 %v968
        %v970 = vpop.xlane.xlu0 %969
        %v971 = vsel %vm379, %v965, 0.0
        %972 = vadd.xlane.f32.xlu0 %v971
        %v973 = vpop.xlane.xlu0 %972
        %v974 = vadd.f32 %v970, 1e-06
        %v975 = vadd.f32 %v973, 1e-06
        %v976 = vrcp.pop %v974
        %v977 = vmul.f32 1.0, %v976
        %v978 = vrcp.pop %v975
        %v979 = vmul.f32 1.0, %v978
        %982 = vrot.lane.b32.xlu0 %v944, 64
        %v983 = vpop.permute.xlu0 %982
        %984 = vrot.lane.b32.xlu0 %v945, 64
        %v985 = vpop.permute.xlu0 %984
        %988 = vxpose.xlu0.b32.start [1/16] %v983, 128
        %989 = vxpose.xlu0.b32.cont [2/16] %v985, 128
        %990 = vxpose.xlu0.b32.cont [3/16] 0.0, 128
        %991 = vxpose.xlu0.b32.cont [4/16] 0.0, 128
        %992 = vxpose.xlu0.b32.cont [5/16] 0.0, 128
        %993 = vxpose.xlu0.b32.cont [6/16] 0.0, 128
        %994 = vxpose.xlu0.b32.cont [7/16] 0.0, 128
        %995 = vxpose.xlu0.b32.cont [8/16] 0.0, 128
        %996 = vxpose.xlu0.b32.cont [9/16] 0.0, 128
        %997 = vxpose.xlu0.b32.cont [10/16] 0.0, 128
        %998 = vxpose.xlu0.b32.cont [11/16] 0.0, 128
        %999 = vxpose.xlu0.b32.cont [12/16] 0.0, 128
        %1000 = vxpose.xlu0.b32.cont [13/16] 0.0, 128
        %1001 = vxpose.xlu0.b32.cont [14/16] 0.0, 128
        %1002 = vxpose.xlu0.b32.cont [15/16] 0.0, 128
        %1003 = vxpose.xlu0.b32.end [16/16] 0.0, 128
        %v1004 = vpop.trf.xlu0
        %v1005 = vpop.trf.xlu0
        %v1006 = vpop.trf.xlu0
        %v1007 = vpop.trf.xlu0
        %v1008 = vpop.trf.xlu0
        %v1009 = vpop.trf.xlu0
        %v1010 = vpop.trf.xlu0
        %v1011 = vpop.trf.xlu0
        %v1012 = vpop.trf.xlu0
        %v1013 = vpop.trf.xlu0
        %v1014 = vpop.trf.xlu0
        %v1015 = vpop.trf.xlu0
        %v1016 = vpop.trf.xlu0
        %v1017 = vpop.trf.xlu0
        %v1018 = vpop.trf.xlu0
        %v1019 = vpop.trf.xlu0
        %1022 = vrot.lane.b32.xlu0 %v946, 64
        %v1023 = vpop.permute.xlu0 %1022
        %1024 = vrot.lane.b32.xlu0 %v947, 64
        %v1025 = vpop.permute.xlu0 %1024
        %v1029 = vsel %vm435, %v1004, 0
        %v1032 = vsel %vm435, %v1005, 0
        %v1035 = vsel %vm435, %v1006, 0
        %v1038 = vsel %vm435, %v1007, 0
        %1040 = vmatprep.subr.mxu0 0.0
        %1041 = vmatpush1.msra.mxu0 0.0
        %1042 = vmatprep.subr.mxu0 0.0
        %1043 = vmatpush1.msra.mxu0 0.0
        %1044 = vmatprep.subr.mxu0 0.0
        %1045 = vmatpush1.msra.mxu0 0.0
        %1046 = vmatprep.subr.mxu0 0.0
        %1047 = vmatpush1.msra.mxu0 0.0
        %1048 = vmatprep.subr.mxu0 0.0
        %1049 = vmatpush1.msra.mxu0 0.0
        %1050 = vmatprep.subr.mxu0 0.0
        %1051 = vmatpush1.msra.mxu0 0.0
        %1052 = vmatprep.subr.mxu0 0.0
        %1053 = vmatpush1.msra.mxu0 0.0
        %1054 = vmatprep.subr.mxu0 0.0
        %1055 = vmatpush1.msra.mxu0 0.0
        %1056 = vmatprep.subr.mxu0 0.0
        %1057 = vmatpush1.msra.mxu0 0.0
        %1058 = vmatprep.subr.mxu0 0.0
        %1059 = vmatpush1.msra.mxu0 0.0
        %1060 = vmatprep.subr.mxu0 0.0
        %1061 = vmatpush1.msra.mxu0 0.0
        %1062 = vmatprep.subr.mxu0 0.0
        %1063 = vmatpush1.msra.mxu0 0.0
        %1064 = vmatprep.subr.mxu0 0.0
        %1065 = vmatpush1.msra.mxu0 0.0
        %1066 = vmatprep.subr.mxu0 0.0
        %1067 = vmatpush1.msra.mxu0 0.0
        %1068 = vmatprep.subr.mxu0 0.0
        %1069 = vmatpush1.msra.mxu0 %v1025
        %1070 = vmatprep.subr.mxu0 0.0
        %1071 = vmatpush1.msra.mxu0 %v1023
        %1072 = vmatprep.subr.mxu0 0.0
        %1073 = vmatpush2.msra.mxu0 0.0
        %1074 = vmatprep.subr.mxu0 0.0
        %1075 = vmatpush2.msra.mxu0 0.0
        %1076 = vmatprep.subr.mxu0 0.0
        %1077 = vmatpush2.msra.mxu0 0.0
        %1078 = vmatprep.subr.mxu0 0.0
        %1079 = vmatpush2.msra.mxu0 0.0
        %1080 = vmatprep.subr.mxu0 0.0
        %1081 = vmatpush2.msra.mxu0 0.0
        %1082 = vmatprep.subr.mxu0 0.0
        %1083 = vmatpush2.msra.mxu0 0.0
        %1084 = vmatprep.subr.mxu0 0.0
        %1085 = vmatpush2.msra.mxu0 0.0
        %1086 = vmatprep.subr.mxu0 0.0
        %1087 = vmatpush2.msra.mxu0 0.0
        %1088 = vmatprep.subr.mxu0 0.0
        %1089 = vmatpush2.msra.mxu0 0.0
        %1090 = vmatprep.subr.mxu0 0.0
        %1091 = vmatpush2.msra.mxu0 0.0
        %1092 = vmatprep.subr.mxu0 0.0
        %1093 = vmatpush2.msra.mxu0 0.0
        %1094 = vmatprep.subr.mxu0 0.0
        %1095 = vmatpush2.msra.mxu0 0.0
        %1096 = vmatprep.subr.mxu0 0.0
        %1097 = vmatpush2.msra.mxu0 0.0
        %1098 = vmatprep.subr.mxu0 0.0
        %1099 = vmatpush2.msra.mxu0 0.0
        %1100 = vmatprep.subr.mxu0 0.0
        %1101 = vmatpush2.msra.mxu0 0.0
        %1102 = vmatprep.subr.mxu0 0.0
        %1103 = vmatpush2.msra.mxu0 0.0
        %1104 = vmatprep.mubr.f32.mxu0 0.0
        %1105 = vmatmul.mubr.f32.gmra.mxu0 %v1029
        %v1106 = vpop.f32.mrf.mxu0
        %v1107 = vadd.f32 0.0, %v1106
        %v1108 = vpop.f32.mrf.mxu0
        %1109 = vmatprep.mubr.f32.mxu0 0.0
        %1110 = vmatmul.mubr.f32.gmra.mxu0 %v1032
        %v1111 = vpop.f32.mrf.mxu0
        %v1112 = vadd.f32 0.0, %v1111
        %v1113 = vpop.f32.mrf.mxu0
        %1114 = vmatprep.mubr.f32.mxu0 0.0
        %1115 = vmatmul.mubr.f32.gmra.mxu0 %v1035
        %v1116 = vpop.f32.mrf.mxu0
        %v1117 = vadd.f32 0.0, %v1116
        %v1118 = vpop.f32.mrf.mxu0
        %1119 = vmatprep.mubr.f32.mxu0 0.0
        %1120 = vmatmul.mubr.f32.gmra.mxu0 %v1038
        %v1121 = vpop.f32.mrf.mxu0
        %v1122 = vadd.f32 0.0, %v1121
        %v1123 = vpop.f32.mrf.mxu0
        %1124 = vdwg.mxu0
        %1127 = vrot.lane.b32.xlu0 %v930, 64
        %v1128 = vpop.permute.xlu0 %1127
        %1129 = vrot.lane.b32.xlu0 %v931, 64
        %v1130 = vpop.permute.xlu0 %1129
        %v1131 = vsel %vm379, %v1128, 0
        %v1133 = vsel %vm379, %v1130, 0
        %1135 = vmatprep.subr.mxu0 0.0
        %1136 = vmatpush1.msra.mxu0 0.0
        %1137 = vmatprep.subr.mxu0 0.0
        %1138 = vmatpush1.msra.mxu0 0.0
        %1139 = vmatprep.subr.mxu0 0.0
        %1140 = vmatpush1.msra.mxu0 0.0
        %1141 = vmatprep.subr.mxu0 0.0
        %1142 = vmatpush1.msra.mxu0 0.0
        %1143 = vmatprep.subr.mxu0 0.0
        %1144 = vmatpush1.msra.mxu0 0.0
        %1145 = vmatprep.subr.mxu0 0.0
        %1146 = vmatpush1.msra.mxu0 0.0
        %1147 = vmatprep.subr.mxu0 0.0
        %1148 = vmatpush1.msra.mxu0 0.0
        %1149 = vmatprep.subr.mxu0 0.0
        %1150 = vmatpush1.msra.mxu0 0.0
        %1151 = vmatprep.subr.mxu0 0.0
        %1152 = vmatpush1.msra.mxu0 0.0
        %1153 = vmatprep.subr.mxu0 0.0
        %1154 = vmatpush1.msra.mxu0 0.0
        %1155 = vmatprep.subr.mxu0 0.0
        %1156 = vmatpush1.msra.mxu0 0.0
        %1157 = vmatprep.subr.mxu0 0.0
        %1158 = vmatpush1.msra.mxu0 0.0
        %1159 = vmatprep.subr.mxu0 0.0
        %1160 = vmatpush1.msra.mxu0 %v1122
        %1161 = vmatprep.subr.mxu0 0.0
        %1162 = vmatpush1.msra.mxu0 %v1117
        %1163 = vmatprep.subr.mxu0 0.0
        %1164 = vmatpush1.msra.mxu0 %v1112
        %1165 = vmatprep.subr.mxu0 0.0
        %1166 = vmatpush1.msra.mxu0 %v1107
        %1167 = vmatprep.subr.mxu0 0.0
        %1168 = vmatpush2.msra.mxu0 0.0
        %1169 = vmatprep.subr.mxu0 0.0
        %1170 = vmatpush2.msra.mxu0 0.0
        %1171 = vmatprep.subr.mxu0 0.0
        %1172 = vmatpush2.msra.mxu0 0.0
        %1173 = vmatprep.subr.mxu0 0.0
        %1174 = vmatpush2.msra.mxu0 0.0
        %1175 = vmatprep.subr.mxu0 0.0
        %1176 = vmatpush2.msra.mxu0 0.0
        %1177 = vmatprep.subr.mxu0 0.0
        %1178 = vmatpush2.msra.mxu0 0.0
        %1179 = vmatprep.subr.mxu0 0.0
        %1180 = vmatpush2.msra.mxu0 0.0
        %1181 = vmatprep.subr.mxu0 0.0
        %1182 = vmatpush2.msra.mxu0 0.0
        %1183 = vmatprep.subr.mxu0 0.0
        %1184 = vmatpush2.msra.mxu0 0.0
        %1185 = vmatprep.subr.mxu0 0.0
        %1186 = vmatpush2.msra.mxu0 0.0
        %1187 = vmatprep.subr.mxu0 0.0
        %1188 = vmatpush2.msra.mxu0 0.0
        %1189 = vmatprep.subr.mxu0 0.0
        %1190 = vmatpush2.msra.mxu0 0.0
        %1191 = vmatprep.subr.mxu0 0.0
        %1192 = vmatpush2.msra.mxu0 0.0
        %1193 = vmatprep.subr.mxu0 0.0
        %1194 = vmatpush2.msra.mxu0 0.0
        %1195 = vmatprep.subr.mxu0 0.0
        %1196 = vmatpush2.msra.mxu0 0.0
        %1197 = vmatprep.subr.mxu0 0.0
        %1198 = vmatpush2.msra.mxu0 0.0
        %1199 = vmatprep.mubr.f32.mxu0 0.0
        %1200 = vmatmul.mubr.f32.gmra.mxu0 %v1131
        %v1201 = vpop.f32.mrf.mxu0
        %v1202 = vadd.f32 0.0, %v1201
        %v1203 = vpop.f32.mrf.mxu0
        %1204 = vmatprep.mubr.f32.mxu0 0.0
        %1205 = vmatmul.mubr.f32.gmra.mxu0 %v1133
        %v1206 = vpop.f32.mrf.mxu0
        %v1207 = vadd.f32 0.0, %v1206
        %v1208 = vpop.f32.mrf.mxu0
        %1209 = vdwg.mxu0
        %v1210 = vmul.f32 %v1202, %v977
        %v1211 = vmul.f32 %v1207, %v979
        %1214 = vrot.lane.b32.xlu0 %v1210, 64
        %v1215 = vpop.permute.xlu0 %1214
        %1216 = vrot.lane.b32.xlu0 %v1211, 64
        %v1217 = vpop.permute.xlu0 %1216
        %1220 = vst.msk [vmem:[%s333] sm:$0xff] %vm948, %v1215
        %1221 = vst.msk [vmem:[%s333 + $0x8] sm:$0xff] %vm948, %v1217
        %v1222 = vld [vmem:[%s276] sm:$0xff]
        %v1223 = vld [vmem:[%s276 + $0x8] sm:$0xff]
        %vm1224 = vcmp.gt.f32.partialorder %v1222, 0.0
        %vm1225 = vcmp.gt.f32.partialorder %v1223, 0.0
        %v1226 = vadd.f32 %v1222, 1.0
        %v1227 = vadd.f32 %v1223, 1.0
        %v1228 = vmul.f32 %v1222, 1.442695
        %v1229 = vpow.pop %v1228
        %v1230 = vmul.f32 %v1223, 1.442695
        %v1231 = vpow.pop %v1230
        %v1232 = vsel %vm1224, %v1226, %v1229
        %v1233 = vsel %vm1225, %v1227, %v1231
        %v1234 = vld [vmem:[%s285] sm:$0xff]
        %v1235 = vld [vmem:[%s285 + $0x8] sm:$0xff]
        %vm1236 = vcmp.gt.f32.partialorder %v1234, 0.0
        %vm1237 = vcmp.gt.f32.partialorder %v1235, 0.0
        %v1238 = vadd.f32 %v1234, 1.0
        %v1239 = vadd.f32 %v1235, 1.0
        %v1240 = vmul.f32 %v1234, 1.442695
        %v1241 = vpow.pop %v1240
        %v1242 = vmul.f32 %v1235, 1.442695
        %v1243 = vpow.pop %v1242
        %v1244 = vsel %vm1236, %v1238, %v1241
        %v1245 = vsel %vm1237, %v1239, %v1243
        %v1246 = vmul.f32 %v1244, %v368
        %v1247 = vmul.f32 %v1245, %v373
        %v1248 = vld [vmem:[%s294] sm:$0xff]
        %v1249 = vld [vmem:[%s294 + $0x8] sm:$0xff]
        %vm1250 = vcmask 1048320
        %v1251 = vsel %vm1250, %v1246, 0.0
        %v1252 = vsel %vm1250, %v1247, 0.0
        %v1253 = vadd.f32 %v1251, %v1252
        %v1254 = vrot.slane %v1253, 4
        %v1255 = vadd.f32 %v1253, %v1254
        %v1256 = vrot.slane %v1255, 2
        %v1257 = vadd.f32 %v1255, %v1256
        %v1258 = vrot.slane %v1257, 1
        %v1259 = vadd.f32 %v1257, %v1258
        %v1260 = vmul.f32 %v1232, %v1259
        %v1261 = vmul.f32 %v1233, %v1259
        %1264 = vrot.lane.b32.xlu0 %v1260, 32
        %v1265 = vpop.permute.xlu0 %1264
        %1266 = vrot.lane.b32.xlu0 %v1261, 32
        %v1267 = vpop.permute.xlu0 %1266
        %v1270 = vsel %vm379, %v1265, 0.0
        %1271 = vadd.xlane.f32.xlu0 %v1270
        %v1272 = vpop.xlane.xlu0 %1271
        %v1273 = vsel %vm379, %v1267, 0.0
        %1274 = vadd.xlane.f32.xlu0 %v1273
        %v1275 = vpop.xlane.xlu0 %1274
        %v1276 = vadd.f32 %v1272, 1e-06
        %v1277 = vadd.f32 %v1275, 1e-06
        %v1278 = vrcp.pop %v1276
        %v1279 = vmul.f32 1.0, %v1278
        %v1280 = vrcp.pop %v1277
        %v1281 = vmul.f32 1.0, %v1280
        %1284 = vrot.lane.b32.xlu0 %v1246, 32
        %v1285 = vpop.permute.xlu0 %1284
        %1286 = vrot.lane.b32.xlu0 %v1247, 32
        %v1287 = vpop.permute.xlu0 %1286
        %1290 = vxpose.xlu0.b32.start [1/16] %v1285, 128
        %1291 = vxpose.xlu0.b32.cont [2/16] %v1287, 128
        %1292 = vxpose.xlu0.b32.cont [3/16] 0.0, 128
        %1293 = vxpose.xlu0.b32.cont [4/16] 0.0, 128
        %1294 = vxpose.xlu0.b32.cont [5/16] 0.0, 128
        %1295 = vxpose.xlu0.b32.cont [6/16] 0.0, 128
        %1296 = vxpose.xlu0.b32.cont [7/16] 0.0, 128
        %1297 = vxpose.xlu0.b32.cont [8/16] 0.0, 128
        %1298 = vxpose.xlu0.b32.cont [9/16] 0.0, 128
        %1299 = vxpose.xlu0.b32.cont [10/16] 0.0, 128
        %1300 = vxpose.xlu0.b32.cont [11/16] 0.0, 128
        %1301 = vxpose.xlu0.b32.cont [12/16] 0.0, 128
        %1302 = vxpose.xlu0.b32.cont [13/16] 0.0, 128
        %1303 = vxpose.xlu0.b32.cont [14/16] 0.0, 128
        %1304 = vxpose.xlu0.b32.cont [15/16] 0.0, 128
        %1305 = vxpose.xlu0.b32.end [16/16] 0.0, 128
        %v1306 = vpop.trf.xlu0
        %v1307 = vpop.trf.xlu0
        %v1308 = vpop.trf.xlu0
        %v1309 = vpop.trf.xlu0
        %v1310 = vpop.trf.xlu0
        %v1311 = vpop.trf.xlu0
        %v1312 = vpop.trf.xlu0
        %v1313 = vpop.trf.xlu0
        %v1314 = vpop.trf.xlu0
        %v1315 = vpop.trf.xlu0
        %v1316 = vpop.trf.xlu0
        %v1317 = vpop.trf.xlu0
        %v1318 = vpop.trf.xlu0
        %v1319 = vpop.trf.xlu0
        %v1320 = vpop.trf.xlu0
        %v1321 = vpop.trf.xlu0
        %1324 = vrot.lane.b32.xlu0 %v1248, 32
        %v1325 = vpop.permute.xlu0 %1324
        %1326 = vrot.lane.b32.xlu0 %v1249, 32
        %v1327 = vpop.permute.xlu0 %1326
        %v1331 = vsel %vm435, %v1306, 0
        %v1334 = vsel %vm435, %v1307, 0
        %v1337 = vsel %vm435, %v1308, 0
        %v1340 = vsel %vm435, %v1309, 0
        %1342 = vmatprep.subr.mxu0 0.0
        %1343 = vmatpush1.msra.mxu0 0.0
        %1344 = vmatprep.subr.mxu0 0.0
        %1345 = vmatpush1.msra.mxu0 0.0
        %1346 = vmatprep.subr.mxu0 0.0
        %1347 = vmatpush1.msra.mxu0 0.0
        %1348 = vmatprep.subr.mxu0 0.0
        %1349 = vmatpush1.msra.mxu0 0.0
        %1350 = vmatprep.subr.mxu0 0.0
        %1351 = vmatpush1.msra.mxu0 0.0
        %1352 = vmatprep.subr.mxu0 0.0
        %1353 = vmatpush1.msra.mxu0 0.0
        %1354 = vmatprep.subr.mxu0 0.0
        %1355 = vmatpush1.msra.mxu0 0.0
        %1356 = vmatprep.subr.mxu0 0.0
        %1357 = vmatpush1.msra.mxu0 0.0
        %1358 = vmatprep.subr.mxu0 0.0
        %1359 = vmatpush1.msra.mxu0 0.0
        %1360 = vmatprep.subr.mxu0 0.0
        %1361 = vmatpush1.msra.mxu0 0.0
        %1362 = vmatprep.subr.mxu0 0.0
        %1363 = vmatpush1.msra.mxu0 0.0
        %1364 = vmatprep.subr.mxu0 0.0
        %1365 = vmatpush1.msra.mxu0 0.0
        %1366 = vmatprep.subr.mxu0 0.0
        %1367 = vmatpush1.msra.mxu0 0.0
        %1368 = vmatprep.subr.mxu0 0.0
        %1369 = vmatpush1.msra.mxu0 0.0
        %1370 = vmatprep.subr.mxu0 0.0
        %1371 = vmatpush1.msra.mxu0 %v1327
        %1372 = vmatprep.subr.mxu0 0.0
        %1373 = vmatpush1.msra.mxu0 %v1325
        %1374 = vmatprep.subr.mxu0 0.0
        %1375 = vmatpush2.msra.mxu0 0.0
        %1376 = vmatprep.subr.mxu0 0.0
        %1377 = vmatpush2.msra.mxu0 0.0
        %1378 = vmatprep.subr.mxu0 0.0
        %1379 = vmatpush2.msra.mxu0 0.0
        %1380 = vmatprep.subr.mxu0 0.0
        %1381 = vmatpush2.msra.mxu0 0.0
        %1382 = vmatprep.subr.mxu0 0.0
        %1383 = vmatpush2.msra.mxu0 0.0
        %1384 = vmatprep.subr.mxu0 0.0
        %1385 = vmatpush2.msra.mxu0 0.0
        %1386 = vmatprep.subr.mxu0 0.0
        %1387 = vmatpush2.msra.mxu0 0.0
        %1388 = vmatprep.subr.mxu0 0.0
        %1389 = vmatpush2.msra.mxu0 0.0
        %1390 = vmatprep.subr.mxu0 0.0
        %1391 = vmatpush2.msra.mxu0 0.0
        %1392 = vmatprep.subr.mxu0 0.0
        %1393 = vmatpush2.msra.mxu0 0.0
        %1394 = vmatprep.subr.mxu0 0.0
        %1395 = vmatpush2.msra.mxu0 0.0
        %1396 = vmatprep.subr.mxu0 0.0
        %1397 = vmatpush2.msra.mxu0 0.0
        %1398 = vmatprep.subr.mxu0 0.0
        %1399 = vmatpush2.msra.mxu0 0.0
        %1400 = vmatprep.subr.mxu0 0.0
        %1401 = vmatpush2.msra.mxu0 0.0
        %1402 = vmatprep.subr.mxu0 0.0
        %1403 = vmatpush2.msra.mxu0 0.0
        %1404 = vmatprep.subr.mxu0 0.0
        %1405 = vmatpush2.msra.mxu0 0.0
        %1406 = vmatprep.mubr.f32.mxu0 0.0
        %1407 = vmatmul.mubr.f32.gmra.mxu0 %v1331
        %v1408 = vpop.f32.mrf.mxu0
        %v1409 = vadd.f32 0.0, %v1408
        %v1410 = vpop.f32.mrf.mxu0
        %1411 = vmatprep.mubr.f32.mxu0 0.0
        %1412 = vmatmul.mubr.f32.gmra.mxu0 %v1334
        %v1413 = vpop.f32.mrf.mxu0
        %v1414 = vadd.f32 0.0, %v1413
        %v1415 = vpop.f32.mrf.mxu0
        %1416 = vmatprep.mubr.f32.mxu0 0.0
        %1417 = vmatmul.mubr.f32.gmra.mxu0 %v1337
        %v1418 = vpop.f32.mrf.mxu0
        %v1419 = vadd.f32 0.0, %v1418
        %v1420 = vpop.f32.mrf.mxu0
        %1421 = vmatprep.mubr.f32.mxu0 0.0
        %1422 = vmatmul.mubr.f32.gmra.mxu0 %v1340
        %v1423 = vpop.f32.mrf.mxu0
        %v1424 = vadd.f32 0.0, %v1423
        %v1425 = vpop.f32.mrf.mxu0
        %1426 = vdwg.mxu0
        %1429 = vrot.lane.b32.xlu0 %v1232, 32
        %v1430 = vpop.permute.xlu0 %1429
        %1431 = vrot.lane.b32.xlu0 %v1233, 32
        %v1432 = vpop.permute.xlu0 %1431
        %v1433 = vsel %vm379, %v1430, 0
        %v1435 = vsel %vm379, %v1432, 0
        %1437 = vmatprep.subr.mxu0 0.0
        %1438 = vmatpush1.msra.mxu0 0.0
        %1439 = vmatprep.subr.mxu0 0.0
        %1440 = vmatpush1.msra.mxu0 0.0
        %1441 = vmatprep.subr.mxu0 0.0
        %1442 = vmatpush1.msra.mxu0 0.0
        %1443 = vmatprep.subr.mxu0 0.0
        %1444 = vmatpush1.msra.mxu0 0.0
        %1445 = vmatprep.subr.mxu0 0.0
        %1446 = vmatpush1.msra.mxu0 0.0
        %1447 = vmatprep.subr.mxu0 0.0
        %1448 = vmatpush1.msra.mxu0 0.0
        %1449 = vmatprep.subr.mxu0 0.0
        %1450 = vmatpush1.msra.mxu0 0.0
        %1451 = vmatprep.subr.mxu0 0.0
        %1452 = vmatpush1.msra.mxu0 0.0
        %1453 = vmatprep.subr.mxu0 0.0
        %1454 = vmatpush1.msra.mxu0 0.0
        %1455 = vmatprep.subr.mxu0 0.0
        %1456 = vmatpush1.msra.mxu0 0.0
        %1457 = vmatprep.subr.mxu0 0.0
        %1458 = vmatpush1.msra.mxu0 0.0
        %1459 = vmatprep.subr.mxu0 0.0
        %1460 = vmatpush1.msra.mxu0 0.0
        %1461 = vmatprep.subr.mxu0 0.0
        %1462 = vmatpush1.msra.mxu0 %v1424
        %1463 = vmatprep.subr.mxu0 0.0
        %1464 = vmatpush1.msra.mxu0 %v1419
        %1465 = vmatprep.subr.mxu0 0.0
        %1466 = vmatpush1.msra.mxu0 %v1414
        %1467 = vmatprep.subr.mxu0 0.0
        %1468 = vmatpush1.msra.mxu0 %v1409
        %1469 = vmatprep.subr.mxu0 0.0
        %1470 = vmatpush2.msra.mxu0 0.0
        %1471 = vmatprep.subr.mxu0 0.0
        %1472 = vmatpush2.msra.mxu0 0.0
        %1473 = vmatprep.subr.mxu0 0.0
        %1474 = vmatpush2.msra.mxu0 0.0
        %1475 = vmatprep.subr.mxu0 0.0
        %1476 = vmatpush2.msra.mxu0 0.0
        %1477 = vmatprep.subr.mxu0 0.0
        %1478 = vmatpush2.msra.mxu0 0.0
        %1479 = vmatprep.subr.mxu0 0.0
        %1480 = vmatpush2.msra.mxu0 0.0
        %1481 = vmatprep.subr.mxu0 0.0
        %1482 = vmatpush2.msra.mxu0 0.0
        %1483 = vmatprep.subr.mxu0 0.0
        %1484 = vmatpush2.msra.mxu0 0.0
        %1485 = vmatprep.subr.mxu0 0.0
        %1486 = vmatpush2.msra.mxu0 0.0
        %1487 = vmatprep.subr.mxu0 0.0
        %1488 = vmatpush2.msra.mxu0 0.0
        %1489 = vmatprep.subr.mxu0 0.0
        %1490 = vmatpush2.msra.mxu0 0.0
        %1491 = vmatprep.subr.mxu0 0.0
        %1492 = vmatpush2.msra.mxu0 0.0
        %1493 = vmatprep.subr.mxu0 0.0
        %1494 = vmatpush2.msra.mxu0 0.0
        %1495 = vmatprep.subr.mxu0 0.0
        %1496 = vmatpush2.msra.mxu0 0.0
        %1497 = vmatprep.subr.mxu0 0.0
        %1498 = vmatpush2.msra.mxu0 0.0
        %1499 = vmatprep.subr.mxu0 0.0
        %1500 = vmatpush2.msra.mxu0 0.0
        %1501 = vmatprep.mubr.f32.mxu0 0.0
        %1502 = vmatmul.mubr.f32.gmra.mxu0 %v1433
        %v1503 = vpop.f32.mrf.mxu0
        %v1504 = vadd.f32 0.0, %v1503
        %v1505 = vpop.f32.mrf.mxu0
        %1506 = vmatprep.mubr.f32.mxu0 0.0
        %1507 = vmatmul.mubr.f32.gmra.mxu0 %v1435
        %v1508 = vpop.f32.mrf.mxu0
        %v1509 = vadd.f32 0.0, %v1508
        %v1510 = vpop.f32.mrf.mxu0
        %1511 = vdwg.mxu0
        %v1512 = vmul.f32 %v1504, %v1279
        %v1513 = vmul.f32 %v1509, %v1281
        %1516 = vrot.lane.b32.xlu0 %v1512, 96
        %v1517 = vpop.permute.xlu0 %1516
        %1518 = vrot.lane.b32.xlu0 %v1513, 96
        %v1519 = vpop.permute.xlu0 %1518
        %1522 = vst.msk [vmem:[%s333] sm:$0xff] %vm1250, %v1517
        %1523 = vst.msk [vmem:[%s333 + $0x8] sm:$0xff] %vm1250, %v1519
        %s1524 = sand.u32 %s156, 1
        %s1525 = scalar_lea.sflag [#allocation4], %s1524
        %s1526 = sand.u32 %s156, 1
        %s1527 = smul.addr %s1526, 16
        %s1528 = scalar_lea.vmem [#allocation8], %s1527
        // Predicated region
        $region49: #{tpu_custom_call.1} parent=35 // pred_check
          %p1529 = pneg %p166
        $region50: #{tpu_custom_call.1} parent=35 // pred_check_branch
          %1531 = sbr.rel (%p1529) target = $region52
        $region51: #{tpu_custom_call.1} parent=35 // pred_region
          %s1533 = ssub.s32 256, 256
          %1534 = vsyncadd %s1525, %s1533
          %s1535 = smul.addr %s29, 2
          %s1536 = smul.addr %s28, 6
          %s1537 = sadd.s32 %s1535, %s1536
          %s1538 = smul.addr %s1537, 128
          %s1539 = scalar_lea.hbm %s4, %s1538
          %s1540 = sshll.u32 %s1528, 4
          %s1541 = int_to_ptr.vmem [resolvable:$true] %s1540
          %1546 = dma.vmem_to_hbm [thread:$0]  %s1541, 256, %s1539, %s1525, 128, 128, 8
        $region52: #{tpu_custom_call.1} parent=35 // pred_fallthru
          _
      $region36: #{tpu_custom_call.1} parent=5 // pred_fallthru
        _
      %p1547 = scmp.le.s32.totalorder 2, %s19
      // Predicated region
      $region53: #{tpu_custom_call.1} parent=5 // pred_check
        %p1548 = pneg %p1547
      $region54: #{tpu_custom_call.1} parent=5 // pred_check_branch
        %1550 = sbr.rel (%p1548) target = $region56
      $region55: #{tpu_custom_call.1} parent=5 // pred_region
        %s1551 = ssub.s32 %s19, 2
        // Predicated region
        $region57: #{tpu_custom_call.1} parent=55 // pred_check
          %p1552 = pneg %p172
        $region58: #{tpu_custom_call.1} parent=55 // pred_check_branch
          %1554 = sbr.rel (%p1552) target = $region60
        $region59: #{tpu_custom_call.1} parent=55 // pred_region
          %s1555 = sand.u32 %s157, 1
          %s1556 = scalar_lea.sflag [#allocation4], %s1555
          %s1557 = sand.u32 %s157, 1
          %s1558 = smul.addr %s1557, 16
          %s1559 = scalar_lea.vmem [#allocation8], %s1558
          %1560 = dma.done %s1556, 256
        $region60: #{tpu_custom_call.1} parent=55 // pred_fallthru
          _
      $region56: #{tpu_custom_call.1} parent=5 // pred_fallthru
        _
    $region6: #{tpu_custom_call.1} parent=1 // loop_footer
      %s23 = sadd.s32 1, %s19
    $region7: #{tpu_custom_call.1} parent=1 // loop_footer_branch
      %18 = sbr.rel target = $region3
    $region8: #{tpu_custom_call.1} parent=1 // loop_exit
      _
    %1561 = vsyncpa [#allocation3], 1
    %s1562 = scalar_lea.sflag [#allocation3], 1
    %1563 = vsyncpa %s1562, 1
    %1564 = vsyncpa [#allocation6], 1
    %s1565 = scalar_lea.sflag [#allocation6], 1
    %1566 = vsyncpa %s1565, 1
    %1567 = vsyncpa [#allocation4], 1
    %s1568 = scalar_lea.sflag [#allocation4], 1
    %1569 = vsyncpa %s1568, 1

</llo_original>
